<compile_context>
chip_gen: v7x
topology: tpu7x:2x2x1
jax: 0.10.0
libtpu: 0.0.40
codegen_flags: <defaults>
</compile_context>

<pallas_src>
import jax
import jax.numpy as jnp
from jax.experimental import pallas as pl
from jax.experimental.pallas import tpu as pltpu

INPUT_SIZE = 1
HIDDEN_SIZE = 50
OUTPUT_SIZE = 1

LANES = 128        # batch maps onto the lane (last, fast) axis
CHUNK_ROWS = 32    # sublane rows per inner step: (32,128) f32 = 4 vregs/value
ROW_TILE = 1024    # sublane rows per grid step: (1024,128) f32 = 512 KiB


def mlp_kernel(w1_ref, b1_ref, w2_ref, b2_ref, x_ref, o_ref):
    """out[r, l] = sum_j w2[j] * relu(w1[j] * x[r, l] + b1[j]) + b2.

    Batch lives on (sublane, lane). The hidden dimension is a fully unrolled
    loop over SMEM scalars -> only VPU ops (no MXU / XLU). The chunk loop
    keeps x/acc/h at 4 vregs each so nothing spills.
    """
    rows = x_ref.shape[0]                 # static block shape
    n_chunks = rows // CHUNK_ROWS
    b2 = b2_ref[0]

    @pl.loop(0, n_chunks)
    def _(c):
        r0 = pl.multiple_of(c * CHUNK_ROWS, CHUNK_ROWS)
        x = x_ref[pl.ds(r0, CHUNK_ROWS), :]          # (CHUNK_ROWS, 128)
        acc = jnp.zeros_like(x)
        for j in range(HIDDEN_SIZE):                 # unrolled at trace time
            h = jnp.maximum(x * w1_ref[j] + b1_ref[j], 0.0)
            acc = acc + h * w2_ref[j]
        o_ref[pl.ds(r0, CHUNK_ROWS), :] = acc + b2


@jax.jit
def one_model_forward(x, w1, b1, w2, b2):
    """x: (B, 1) f32.  w1/b1/w2: (HIDDEN_SIZE,) f32, b2: (1,) f32 (SMEM).
    Returns (B, 1) f32."""
    B, in_f = x.shape
    assert in_f == INPUT_SIZE, "One_Model has input_size == 1"

    # Lane-dense slab: pad B with zeros up to rows*128 where rows is a
    # multiple of CHUNK_ROWS (also satisfies the (8,128) layout).
    rows = pl.cdiv(B, LANES)
    rows = pl.cdiv(rows, CHUNK_ROWS) * CHUNK_ROWS
    padded = rows * LANES
    x_slab = jnp.pad(x.reshape(-1), (0, padded - B)).reshape(rows, LANES)

    tb = min(ROW_TILE, rows)              # single step for small batches
    grid = (pl.cdiv(rows, tb),)           # multi-step parallel grid for huge B

    cost = pl.CostEstimate(
        flops=(5 * HIDDEN_SIZE + 1) * padded,
        transcendentals=0,
        bytes_accessed=(2 * padded + 3 * HIDDEN_SIZE + 1) * 4,
    )

    smem = pl.BlockSpec(memory_space=pltpu.MemorySpace.SMEM)
    out_slab = pl.pallas_call(
        mlp_kernel,
        out_shape=jax.ShapeDtypeStruct((rows, LANES), jnp.float32),
        grid=grid,
        in_specs=[smem, smem, smem, smem,
                  pl.BlockSpec((tb, LANES), lambda i: (i, 0))],
        out_specs=pl.BlockSpec((tb, LANES), lambda i: (i, 0)),
        compiler_params=pltpu.CompilerParams(
            dimension_semantics=("parallel",)),
        cost_estimate=cost,
    )(w1, b1, w2, b2, x_slab)

    return out_slab.reshape(-1)[:B].reshape(B, OUTPUT_SIZE)


def init_params(key, input_size, hidden_size, output_size):
    """Deterministic init matching torch.nn.Linear's U(-1/sqrt(fan_in), +)."""
    k1, k2, k3, k4 = jax.random.split(key, 4)
    bound1 = 1.0 / jnp.sqrt(float(input_size))
    bound2 = 1.0 / jnp.sqrt(float(hidden_size))
    # stored as (in, out) = W^T relative to PyTorch's (out, in)
    w1 = jax.random.uniform(k1, (input_size, hidden_size), jnp.float32,
                            -bound1, bound1)
    b1 = jax.random.uniform(k2, (hidden_size,), jnp.float32, -bound1, bound1)
    w2 = jax.random.uniform(k3, (hidden_size, output_size), jnp.float32,
                            -bound2, bound2)
    b2 = jax.random.uniform(k4, (output_size,), jnp.float32, -bound2, bound2)
    return w1, b1, w2, b2


def prepare_params(w1, b1, w2, b2):
    """One-time flattening of the tiny parameters into 1-D SMEM-friendly
    vectors (done OUTSIDE the jitted forward)."""
    assert w1.shape == (INPUT_SIZE, HIDDEN_SIZE)
    assert w2.shape == (HIDDEN_SIZE, OUTPUT_SIZE)
    return (w1.reshape(-1).astype(jnp.float32),
            b1.reshape(-1).astype(jnp.float32),
            w2.reshape(-1).astype(jnp.float32),
            b2.reshape(-1).astype(jnp.float32))


def reference_forward(x, w1, b1, w2, b2):
    h = jnp.maximum(x @ w1 + b1, 0.0)
    return h @ w2 + b2


if __name__ == "__main__":
    key = jax.random.PRNGKey(0)
    k_param, k_x, k_x2 = jax.random.split(key, 3)

    w1, b1, w2, b2 = init_params(k_param, INPUT_SIZE, HIDDEN_SIZE, OUTPUT_SIZE)
    params = prepare_params(w1, b1, w2, b2)   # one-time, not per call

    # small batch of scalar inputs, matching Linear(1, hidden)
    x = jax.random.normal(k_x, (8, INPUT_SIZE), jnp.float32)
    out = jax.block_until_ready(one_model_forward(x, *params))
    ref = reference_forward(x, w1, b1, w2, b2)
    assert out.shape == (8, OUTPUT_SIZE), out.shape
    assert jnp.allclose(out, ref, atol=1e-5, rtol=1e-5), (out, ref)

    # larger batch exercises the lane-dense padding / tail-slicing path
    x_big = jax.random.normal(k_x2, (2088, INPUT_SIZE), jnp.float32)
    out_big = jax.block_until_ready(one_model_forward(x_big, *params))
    ref_big = reference_forward(x_big, w1, b1, w2, b2)
    assert out_big.shape == (2088, OUTPUT_SIZE), out_big.shape
    assert jnp.allclose(out_big, ref_big, atol=1e-5, rtol=1e-5)

    print("KERNEL_OK")
</pallas_src>

<mosaic_0001>
module attributes {stable_mosaic.version = 11 : i64} {
  func.func @mlp_kernel(%arg0: i32, %arg1: memref<50xf32, #tpu.memory_space<smem>>, %arg2: memref<50xf32, #tpu.memory_space<smem>>, %arg3: memref<50xf32, #tpu.memory_space<smem>>, %arg4: memref<1xf32, #tpu.memory_space<smem>>, %arg5: memref<32x128xf32, #tpu.memory_space<vmem>>, %arg6: memref<32x128xf32, #tpu.memory_space<vmem>>) attributes {dimension_semantics = [#tpu.dimension_semantics<parallel>], iteration_bounds = array<i64: 1>, scalar_prefetch = 0 : i64, scratch_operands = 0 : i64, tpu.core_type = #tpu.core_type<tc>, window_params = [{transform_indices = @transform_0, window_bounds = array<i64: 50>}, {transform_indices = @transform_1, window_bounds = array<i64: 50>}, {transform_indices = @transform_2, window_bounds = array<i64: 50>}, {transform_indices = @transform_3, window_bounds = array<i64: 1>}, {transform_indices = @transform_4, window_bounds = array<i64: 32, 128>}, {transform_indices = @transform_5, window_bounds = array<i64: 32, 128>}]} {
    %c0 = arith.constant 0 : index
    %0 = memref.load %arg4[%c0] : memref<1xf32, #tpu.memory_space<smem>>
    %c0_i32 = arith.constant 0 : i32
    %c1_i32 = arith.constant 1 : i32
    %1 = arith.muli %c0_i32, %c1_i32 : i32
    %c0_i32_0 = arith.constant 0 : i32
    %2 = arith.addi %c0_i32_0, %1 : i32
    %c32_i32 = arith.constant 32 : i32
    %3 = arith.muli %2, %c32_i32 : i32
    %4 = tpu.assume_multiple %3, 32 : i32
    %5 = arith.index_cast %4 : i32 to index
    %c0_1 = arith.constant 0 : index
    %6 = vector.load %arg5[%5, %c0_1] : memref<32x128xf32, #tpu.memory_space<vmem>>, vector<32x128xf32>
    %cst = arith.constant 0.000000e+00 : f32
    %7 = vector.broadcast %cst : f32 to vector<32x128xf32>
    %c0_2 = arith.constant 0 : index
    %8 = memref.load %arg1[%c0_2] : memref<50xf32, #tpu.memory_space<smem>>
    %9 = vector.broadcast %8 : f32 to vector<32x128xf32>
    %10 = arith.mulf %6, %9 : vector<32x128xf32>
    %c0_3 = arith.constant 0 : index
    %11 = memref.load %arg2[%c0_3] : memref<50xf32, #tpu.memory_space<smem>>
    %12 = vector.broadcast %11 : f32 to vector<32x128xf32>
    %13 = arith.addf %10, %12 : vector<32x128xf32>
    %cst_4 = arith.constant 0.000000e+00 : f32
    %14 = vector.broadcast %cst_4 : f32 to vector<32x128xf32>
    %15 = arith.maximumf %13, %14 : vector<32x128xf32>
    %c0_5 = arith.constant 0 : index
    %16 = memref.load %arg3[%c0_5] : memref<50xf32, #tpu.memory_space<smem>>
    %17 = vector.broadcast %16 : f32 to vector<32x128xf32>
    %18 = arith.mulf %15, %17 : vector<32x128xf32>
    %19 = arith.addf %7, %18 : vector<32x128xf32>
    %c1 = arith.constant 1 : index
    %20 = memref.load %arg1[%c1] : memref<50xf32, #tpu.memory_space<smem>>
    %21 = vector.broadcast %20 : f32 to vector<32x128xf32>
    %22 = arith.mulf %6, %21 : vector<32x128xf32>
    %c1_6 = arith.constant 1 : index
    %23 = memref.load %arg2[%c1_6] : memref<50xf32, #tpu.memory_space<smem>>
    %24 = vector.broadcast %23 : f32 to vector<32x128xf32>
    %25 = arith.addf %22, %24 : vector<32x128xf32>
    %cst_7 = arith.constant 0.000000e+00 : f32
    %26 = vector.broadcast %cst_7 : f32 to vector<32x128xf32>
    %27 = arith.maximumf %25, %26 : vector<32x128xf32>
    %c1_8 = arith.constant 1 : index
    %28 = memref.load %arg3[%c1_8] : memref<50xf32, #tpu.memory_space<smem>>
    %29 = vector.broadcast %28 : f32 to vector<32x128xf32>
    %30 = arith.mulf %27, %29 : vector<32x128xf32>
    %31 = arith.addf %19, %30 : vector<32x128xf32>
    %c2 = arith.constant 2 : index
    %32 = memref.load %arg1[%c2] : memref<50xf32, #tpu.memory_space<smem>>
    %33 = vector.broadcast %32 : f32 to vector<32x128xf32>
    %34 = arith.mulf %6, %33 : vector<32x128xf32>
    %c2_9 = arith.constant 2 : index
    %35 = memref.load %arg2[%c2_9] : memref<50xf32, #tpu.memory_space<smem>>
    %36 = vector.broadcast %35 : f32 to vector<32x128xf32>
    %37 = arith.addf %34, %36 : vector<32x128xf32>
    %cst_10 = arith.constant 0.000000e+00 : f32
    %38 = vector.broadcast %cst_10 : f32 to vector<32x128xf32>
    %39 = arith.maximumf %37, %38 : vector<32x128xf32>
    %c2_11 = arith.constant 2 : index
    %40 = memref.load %arg3[%c2_11] : memref<50xf32, #tpu.memory_space<smem>>
    %41 = vector.broadcast %40 : f32 to vector<32x128xf32>
    %42 = arith.mulf %39, %41 : vector<32x128xf32>
    %43 = arith.addf %31, %42 : vector<32x128xf32>
    %c3 = arith.constant 3 : index
    %44 = memref.load %arg1[%c3] : memref<50xf32, #tpu.memory_space<smem>>
    %45 = vector.broadcast %44 : f32 to vector<32x128xf32>
    %46 = arith.mulf %6, %45 : vector<32x128xf32>
    %c3_12 = arith.constant 3 : index
    %47 = memref.load %arg2[%c3_12] : memref<50xf32, #tpu.memory_space<smem>>
    %48 = vector.broadcast %47 : f32 to vector<32x128xf32>
    %49 = arith.addf %46, %48 : vector<32x128xf32>
    %cst_13 = arith.constant 0.000000e+00 : f32
    %50 = vector.broadcast %cst_13 : f32 to vector<32x128xf32>
    %51 = arith.maximumf %49, %50 : vector<32x128xf32>
    %c3_14 = arith.constant 3 : index
    %52 = memref.load %arg3[%c3_14] : memref<50xf32, #tpu.memory_space<smem>>
    %53 = vector.broadcast %52 : f32 to vector<32x128xf32>
    %54 = arith.mulf %51, %53 : vector<32x128xf32>
    %55 = arith.addf %43, %54 : vector<32x128xf32>
    %c4 = arith.constant 4 : index
    %56 = memref.load %arg1[%c4] : memref<50xf32, #tpu.memory_space<smem>>
    %57 = vector.broadcast %56 : f32 to vector<32x128xf32>
    %58 = arith.mulf %6, %57 : vector<32x128xf32>
    %c4_15 = arith.constant 4 : index
    %59 = memref.load %arg2[%c4_15] : memref<50xf32, #tpu.memory_space<smem>>
    %60 = vector.broadcast %59 : f32 to vector<32x128xf32>
    %61 = arith.addf %58, %60 : vector<32x128xf32>
    %cst_16 = arith.constant 0.000000e+00 : f32
    %62 = vector.broadcast %cst_16 : f32 to vector<32x128xf32>
    %63 = arith.maximumf %61, %62 : vector<32x128xf32>
    %c4_17 = arith.constant 4 : index
    %64 = memref.load %arg3[%c4_17] : memref<50xf32, #tpu.memory_space<smem>>
    %65 = vector.broadcast %64 : f32 to vector<32x128xf32>
    %66 = arith.mulf %63, %65 : vector<32x128xf32>
    %67 = arith.addf %55, %66 : vector<32x128xf32>
    %c5 = arith.constant 5 : index
    %68 = memref.load %arg1[%c5] : memref<50xf32, #tpu.memory_space<smem>>
    %69 = vector.broadcast %68 : f32 to vector<32x128xf32>
    %70 = arith.mulf %6, %69 : vector<32x128xf32>
    %c5_18 = arith.constant 5 : index
    %71 = memref.load %arg2[%c5_18] : memref<50xf32, #tpu.memory_space<smem>>
    %72 = vector.broadcast %71 : f32 to vector<32x128xf32>
    %73 = arith.addf %70, %72 : vector<32x128xf32>
    %cst_19 = arith.constant 0.000000e+00 : f32
    %74 = vector.broadcast %cst_19 : f32 to vector<32x128xf32>
    %75 = arith.maximumf %73, %74 : vector<32x128xf32>
    %c5_20 = arith.constant 5 : index
    %76 = memref.load %arg3[%c5_20] : memref<50xf32, #tpu.memory_space<smem>>
    %77 = vector.broadcast %76 : f32 to vector<32x128xf32>
    %78 = arith.mulf %75, %77 : vector<32x128xf32>
    %79 = arith.addf %67, %78 : vector<32x128xf32>
    %c6 = arith.constant 6 : index
    %80 = memref.load %arg1[%c6] : memref<50xf32, #tpu.memory_space<smem>>
    %81 = vector.broadcast %80 : f32 to vector<32x128xf32>
    %82 = arith.mulf %6, %81 : vector<32x128xf32>
    %c6_21 = arith.constant 6 : index
    %83 = memref.load %arg2[%c6_21] : memref<50xf32, #tpu.memory_space<smem>>
    %84 = vector.broadcast %83 : f32 to vector<32x128xf32>
    %85 = arith.addf %82, %84 : vector<32x128xf32>
    %cst_22 = arith.constant 0.000000e+00 : f32
    %86 = vector.broadcast %cst_22 : f32 to vector<32x128xf32>
    %87 = arith.maximumf %85, %86 : vector<32x128xf32>
    %c6_23 = arith.constant 6 : index
    %88 = memref.load %arg3[%c6_23] : memref<50xf32, #tpu.memory_space<smem>>
    %89 = vector.broadcast %88 : f32 to vector<32x128xf32>
    %90 = arith.mulf %87, %89 : vector<32x128xf32>
    %91 = arith.addf %79, %90 : vector<32x128xf32>
    %c7 = arith.constant 7 : index
    %92 = memref.load %arg1[%c7] : memref<50xf32, #tpu.memory_space<smem>>
    %93 = vector.broadcast %92 : f32 to vector<32x128xf32>
    %94 = arith.mulf %6, %93 : vector<32x128xf32>
    %c7_24 = arith.constant 7 : index
    %95 = memref.load %arg2[%c7_24] : memref<50xf32, #tpu.memory_space<smem>>
    %96 = vector.broadcast %95 : f32 to vector<32x128xf32>
    %97 = arith.addf %94, %96 : vector<32x128xf32>
    %cst_25 = arith.constant 0.000000e+00 : f32
    %98 = vector.broadcast %cst_25 : f32 to vector<32x128xf32>
    %99 = arith.maximumf %97, %98 : vector<32x128xf32>
    %c7_26 = arith.constant 7 : index
    %100 = memref.load %arg3[%c7_26] : memref<50xf32, #tpu.memory_space<smem>>
    %101 = vector.broadcast %100 : f32 to vector<32x128xf32>
    %102 = arith.mulf %99, %101 : vector<32x128xf32>
    %103 = arith.addf %91, %102 : vector<32x128xf32>
    %c8 = arith.constant 8 : index
    %104 = memref.load %arg1[%c8] : memref<50xf32, #tpu.memory_space<smem>>
    %105 = vector.broadcast %104 : f32 to vector<32x128xf32>
    %106 = arith.mulf %6, %105 : vector<32x128xf32>
    %c8_27 = arith.constant 8 : index
    %107 = memref.load %arg2[%c8_27] : memref<50xf32, #tpu.memory_space<smem>>
    %108 = vector.broadcast %107 : f32 to vector<32x128xf32>
    %109 = arith.addf %106, %108 : vector<32x128xf32>
    %cst_28 = arith.constant 0.000000e+00 : f32
    %110 = vector.broadcast %cst_28 : f32 to vector<32x128xf32>
    %111 = arith.maximumf %109, %110 : vector<32x128xf32>
    %c8_29 = arith.constant 8 : index
    %112 = memref.load %arg3[%c8_29] : memref<50xf32, #tpu.memory_space<smem>>
    %113 = vector.broadcast %112 : f32 to vector<32x128xf32>
    %114 = arith.mulf %111, %113 : vector<32x128xf32>
    %115 = arith.addf %103, %114 : vector<32x128xf32>
    %c9 = arith.constant 9 : index
    %116 = memref.load %arg1[%c9] : memref<50xf32, #tpu.memory_space<smem>>
    %117 = vector.broadcast %116 : f32 to vector<32x128xf32>
    %118 = arith.mulf %6, %117 : vector<32x128xf32>
    %c9_30 = arith.constant 9 : index
    %119 = memref.load %arg2[%c9_30] : memref<50xf32, #tpu.memory_space<smem>>
    %120 = vector.broadcast %119 : f32 to vector<32x128xf32>
    %121 = arith.addf %118, %120 : vector<32x128xf32>
    %cst_31 = arith.constant 0.000000e+00 : f32
    %122 = vector.broadcast %cst_31 : f32 to vector<32x128xf32>
    %123 = arith.maximumf %121, %122 : vector<32x128xf32>
    %c9_32 = arith.constant 9 : index
    %124 = memref.load %arg3[%c9_32] : memref<50xf32, #tpu.memory_space<smem>>
    %125 = vector.broadcast %124 : f32 to vector<32x128xf32>
    %126 = arith.mulf %123, %125 : vector<32x128xf32>
    %127 = arith.addf %115, %126 : vector<32x128xf32>
    %c10 = arith.constant 10 : index
    %128 = memref.load %arg1[%c10] : memref<50xf32, #tpu.memory_space<smem>>
    %129 = vector.broadcast %128 : f32 to vector<32x128xf32>
    %130 = arith.mulf %6, %129 : vector<32x128xf32>
    %c10_33 = arith.constant 10 : index
    %131 = memref.load %arg2[%c10_33] : memref<50xf32, #tpu.memory_space<smem>>
    %132 = vector.broadcast %131 : f32 to vector<32x128xf32>
    %133 = arith.addf %130, %132 : vector<32x128xf32>
    %cst_34 = arith.constant 0.000000e+00 : f32
    %134 = vector.broadcast %cst_34 : f32 to vector<32x128xf32>
    %135 = arith.maximumf %133, %134 : vector<32x128xf32>
    %c10_35 = arith.constant 10 : index
    %136 = memref.load %arg3[%c10_35] : memref<50xf32, #tpu.memory_space<smem>>
    %137 = vector.broadcast %136 : f32 to vector<32x128xf32>
    %138 = arith.mulf %135, %137 : vector<32x128xf32>
    %139 = arith.addf %127, %138 : vector<32x128xf32>
    %c11 = arith.constant 11 : index
    %140 = memref.load %arg1[%c11] : memref<50xf32, #tpu.memory_space<smem>>
    %141 = vector.broadcast %140 : f32 to vector<32x128xf32>
    %142 = arith.mulf %6, %141 : vector<32x128xf32>
    %c11_36 = arith.constant 11 : index
    %143 = memref.load %arg2[%c11_36] : memref<50xf32, #tpu.memory_space<smem>>
    %144 = vector.broadcast %143 : f32 to vector<32x128xf32>
    %145 = arith.addf %142, %144 : vector<32x128xf32>
    %cst_37 = arith.constant 0.000000e+00 : f32
    %146 = vector.broadcast %cst_37 : f32 to vector<32x128xf32>
    %147 = arith.maximumf %145, %146 : vector<32x128xf32>
    %c11_38 = arith.constant 11 : index
    %148 = memref.load %arg3[%c11_38] : memref<50xf32, #tpu.memory_space<smem>>
    %149 = vector.broadcast %148 : f32 to vector<32x128xf32>
    %150 = arith.mulf %147, %149 : vector<32x128xf32>
    %151 = arith.addf %139, %150 : vector<32x128xf32>
    %c12 = arith.constant 12 : index
    %152 = memref.load %arg1[%c12] : memref<50xf32, #tpu.memory_space<smem>>
    %153 = vector.broadcast %152 : f32 to vector<32x128xf32>
    %154 = arith.mulf %6, %153 : vector<32x128xf32>
    %c12_39 = arith.constant 12 : index
    %155 = memref.load %arg2[%c12_39] : memref<50xf32, #tpu.memory_space<smem>>
    %156 = vector.broadcast %155 : f32 to vector<32x128xf32>
    %157 = arith.addf %154, %156 : vector<32x128xf32>
    %cst_40 = arith.constant 0.000000e+00 : f32
    %158 = vector.broadcast %cst_40 : f32 to vector<32x128xf32>
    %159 = arith.maximumf %157, %158 : vector<32x128xf32>
    %c12_41 = arith.constant 12 : index
    %160 = memref.load %arg3[%c12_41] : memref<50xf32, #tpu.memory_space<smem>>
    %161 = vector.broadcast %160 : f32 to vector<32x128xf32>
    %162 = arith.mulf %159, %161 : vector<32x128xf32>
    %163 = arith.addf %151, %162 : vector<32x128xf32>
    %c13 = arith.constant 13 : index
    %164 = memref.load %arg1[%c13] : memref<50xf32, #tpu.memory_space<smem>>
    %165 = vector.broadcast %164 : f32 to vector<32x128xf32>
    %166 = arith.mulf %6, %165 : vector<32x128xf32>
    %c13_42 = arith.constant 13 : index
    %167 = memref.load %arg2[%c13_42] : memref<50xf32, #tpu.memory_space<smem>>
    %168 = vector.broadcast %167 : f32 to vector<32x128xf32>
    %169 = arith.addf %166, %168 : vector<32x128xf32>
    %cst_43 = arith.constant 0.000000e+00 : f32
    %170 = vector.broadcast %cst_43 : f32 to vector<32x128xf32>
    %171 = arith.maximumf %169, %170 : vector<32x128xf32>
    %c13_44 = arith.constant 13 : index
    %172 = memref.load %arg3[%c13_44] : memref<50xf32, #tpu.memory_space<smem>>
    %173 = vector.broadcast %172 : f32 to vector<32x128xf32>
    %174 = arith.mulf %171, %173 : vector<32x128xf32>
    %175 = arith.addf %163, %174 : vector<32x128xf32>
    %c14 = arith.constant 14 : index
    %176 = memref.load %arg1[%c14] : memref<50xf32, #tpu.memory_space<smem>>
    %177 = vector.broadcast %176 : f32 to vector<32x128xf32>
    %178 = arith.mulf %6, %177 : vector<32x128xf32>
    %c14_45 = arith.constant 14 : index
    %179 = memref.load %arg2[%c14_45] : memref<50xf32, #tpu.memory_space<smem>>
    %180 = vector.broadcast %179 : f32 to vector<32x128xf32>
    %181 = arith.addf %178, %180 : vector<32x128xf32>
    %cst_46 = arith.constant 0.000000e+00 : f32
    %182 = vector.broadcast %cst_46 : f32 to vector<32x128xf32>
    %183 = arith.maximumf %181, %182 : vector<32x128xf32>
    %c14_47 = arith.constant 14 : index
    %184 = memref.load %arg3[%c14_47] : memref<50xf32, #tpu.memory_space<smem>>
    %185 = vector.broadcast %184 : f32 to vector<32x128xf32>
    %186 = arith.mulf %183, %185 : vector<32x128xf32>
    %187 = arith.addf %175, %186 : vector<32x128xf32>
    %c15 = arith.constant 15 : index
    %188 = memref.load %arg1[%c15] : memref<50xf32, #tpu.memory_space<smem>>
    %189 = vector.broadcast %188 : f32 to vector<32x128xf32>
    %190 = arith.mulf %6, %189 : vector<32x128xf32>
    %c15_48 = arith.constant 15 : index
    %191 = memref.load %arg2[%c15_48] : memref<50xf32, #tpu.memory_space<smem>>
    %192 = vector.broadcast %191 : f32 to vector<32x128xf32>
    %193 = arith.addf %190, %192 : vector<32x128xf32>
    %cst_49 = arith.constant 0.000000e+00 : f32
    %194 = vector.broadcast %cst_49 : f32 to vector<32x128xf32>
    %195 = arith.maximumf %193, %194 : vector<32x128xf32>
    %c15_50 = arith.constant 15 : index
    %196 = memref.load %arg3[%c15_50] : memref<50xf32, #tpu.memory_space<smem>>
    %197 = vector.broadcast %196 : f32 to vector<32x128xf32>
    %198 = arith.mulf %195, %197 : vector<32x128xf32>
    %199 = arith.addf %187, %198 : vector<32x128xf32>
    %c16 = arith.constant 16 : index
    %200 = memref.load %arg1[%c16] : memref<50xf32, #tpu.memory_space<smem>>
    %201 = vector.broadcast %200 : f32 to vector<32x128xf32>
    %202 = arith.mulf %6, %201 : vector<32x128xf32>
    %c16_51 = arith.constant 16 : index
    %203 = memref.load %arg2[%c16_51] : memref<50xf32, #tpu.memory_space<smem>>
    %204 = vector.broadcast %203 : f32 to vector<32x128xf32>
    %205 = arith.addf %202, %204 : vector<32x128xf32>
    %cst_52 = arith.constant 0.000000e+00 : f32
    %206 = vector.broadcast %cst_52 : f32 to vector<32x128xf32>
    %207 = arith.maximumf %205, %206 : vector<32x128xf32>
    %c16_53 = arith.constant 16 : index
    %208 = memref.load %arg3[%c16_53] : memref<50xf32, #tpu.memory_space<smem>>
    %209 = vector.broadcast %208 : f32 to vector<32x128xf32>
    %210 = arith.mulf %207, %209 : vector<32x128xf32>
    %211 = arith.addf %199, %210 : vector<32x128xf32>
    %c17 = arith.constant 17 : index
    %212 = memref.load %arg1[%c17] : memref<50xf32, #tpu.memory_space<smem>>
    %213 = vector.broadcast %212 : f32 to vector<32x128xf32>
    %214 = arith.mulf %6, %213 : vector<32x128xf32>
    %c17_54 = arith.constant 17 : index
    %215 = memref.load %arg2[%c17_54] : memref<50xf32, #tpu.memory_space<smem>>
    %216 = vector.broadcast %215 : f32 to vector<32x128xf32>
    %217 = arith.addf %214, %216 : vector<32x128xf32>
    %cst_55 = arith.constant 0.000000e+00 : f32
    %218 = vector.broadcast %cst_55 : f32 to vector<32x128xf32>
    %219 = arith.maximumf %217, %218 : vector<32x128xf32>
    %c17_56 = arith.constant 17 : index
    %220 = memref.load %arg3[%c17_56] : memref<50xf32, #tpu.memory_space<smem>>
    %221 = vector.broadcast %220 : f32 to vector<32x128xf32>
    %222 = arith.mulf %219, %221 : vector<32x128xf32>
    %223 = arith.addf %211, %222 : vector<32x128xf32>
    %c18 = arith.constant 18 : index
    %224 = memref.load %arg1[%c18] : memref<50xf32, #tpu.memory_space<smem>>
    %225 = vector.broadcast %224 : f32 to vector<32x128xf32>
    %226 = arith.mulf %6, %225 : vector<32x128xf32>
    %c18_57 = arith.constant 18 : index
    %227 = memref.load %arg2[%c18_57] : memref<50xf32, #tpu.memory_space<smem>>
    %228 = vector.broadcast %227 : f32 to vector<32x128xf32>
    %229 = arith.addf %226, %228 : vector<32x128xf32>
    %cst_58 = arith.constant 0.000000e+00 : f32
    %230 = vector.broadcast %cst_58 : f32 to vector<32x128xf32>
    %231 = arith.maximumf %229, %230 : vector<32x128xf32>
    %c18_59 = arith.constant 18 : index
    %232 = memref.load %arg3[%c18_59] : memref<50xf32, #tpu.memory_space<smem>>
    %233 = vector.broadcast %232 : f32 to vector<32x128xf32>
    %234 = arith.mulf %231, %233 : vector<32x128xf32>
    %235 = arith.addf %223, %234 : vector<32x128xf32>
    %c19 = arith.constant 19 : index
    %236 = memref.load %arg1[%c19] : memref<50xf32, #tpu.memory_space<smem>>
    %237 = vector.broadcast %236 : f32 to vector<32x128xf32>
    %238 = arith.mulf %6, %237 : vector<32x128xf32>
    %c19_60 = arith.constant 19 : index
    %239 = memref.load %arg2[%c19_60] : memref<50xf32, #tpu.memory_space<smem>>
    %240 = vector.broadcast %239 : f32 to vector<32x128xf32>
    %241 = arith.addf %238, %240 : vector<32x128xf32>
    %cst_61 = arith.constant 0.000000e+00 : f32
    %242 = vector.broadcast %cst_61 : f32 to vector<32x128xf32>
    %243 = arith.maximumf %241, %242 : vector<32x128xf32>
    %c19_62 = arith.constant 19 : index
    %244 = memref.load %arg3[%c19_62] : memref<50xf32, #tpu.memory_space<smem>>
    %245 = vector.broadcast %244 : f32 to vector<32x128xf32>
    %246 = arith.mulf %243, %245 : vector<32x128xf32>
    %247 = arith.addf %235, %246 : vector<32x128xf32>
    %c20 = arith.constant 20 : index
    %248 = memref.load %arg1[%c20] : memref<50xf32, #tpu.memory_space<smem>>
    %249 = vector.broadcast %248 : f32 to vector<32x128xf32>
    %250 = arith.mulf %6, %249 : vector<32x128xf32>
    %c20_63 = arith.constant 20 : index
    %251 = memref.load %arg2[%c20_63] : memref<50xf32, #tpu.memory_space<smem>>
    %252 = vector.broadcast %251 : f32 to vector<32x128xf32>
    %253 = arith.addf %250, %252 : vector<32x128xf32>
    %cst_64 = arith.constant 0.000000e+00 : f32
    %254 = vector.broadcast %cst_64 : f32 to vector<32x128xf32>
    %255 = arith.maximumf %253, %254 : vector<32x128xf32>
    %c20_65 = arith.constant 20 : index
    %256 = memref.load %arg3[%c20_65] : memref<50xf32, #tpu.memory_space<smem>>
    %257 = vector.broadcast %256 : f32 to vector<32x128xf32>
    %258 = arith.mulf %255, %257 : vector<32x128xf32>
    %259 = arith.addf %247, %258 : vector<32x128xf32>
    %c21 = arith.constant 21 : index
    %260 = memref.load %arg1[%c21] : memref<50xf32, #tpu.memory_space<smem>>
    %261 = vector.broadcast %260 : f32 to vector<32x128xf32>
    %262 = arith.mulf %6, %261 : vector<32x128xf32>
    %c21_66 = arith.constant 21 : index
    %263 = memref.load %arg2[%c21_66] : memref<50xf32, #tpu.memory_space<smem>>
    %264 = vector.broadcast %263 : f32 to vector<32x128xf32>
    %265 = arith.addf %262, %264 : vector<32x128xf32>
    %cst_67 = arith.constant 0.000000e+00 : f32
    %266 = vector.broadcast %cst_67 : f32 to vector<32x128xf32>
    %267 = arith.maximumf %265, %266 : vector<32x128xf32>
    %c21_68 = arith.constant 21 : index
    %268 = memref.load %arg3[%c21_68] : memref<50xf32, #tpu.memory_space<smem>>
    %269 = vector.broadcast %268 : f32 to vector<32x128xf32>
    %270 = arith.mulf %267, %269 : vector<32x128xf32>
    %271 = arith.addf %259, %270 : vector<32x128xf32>
    %c22 = arith.constant 22 : index
    %272 = memref.load %arg1[%c22] : memref<50xf32, #tpu.memory_space<smem>>
    %273 = vector.broadcast %272 : f32 to vector<32x128xf32>
    %274 = arith.mulf %6, %273 : vector<32x128xf32>
    %c22_69 = arith.constant 22 : index
    %275 = memref.load %arg2[%c22_69] : memref<50xf32, #tpu.memory_space<smem>>
    %276 = vector.broadcast %275 : f32 to vector<32x128xf32>
    %277 = arith.addf %274, %276 : vector<32x128xf32>
    %cst_70 = arith.constant 0.000000e+00 : f32
    %278 = vector.broadcast %cst_70 : f32 to vector<32x128xf32>
    %279 = arith.maximumf %277, %278 : vector<32x128xf32>
    %c22_71 = arith.constant 22 : index
    %280 = memref.load %arg3[%c22_71] : memref<50xf32, #tpu.memory_space<smem>>
    %281 = vector.broadcast %280 : f32 to vector<32x128xf32>
    %282 = arith.mulf %279, %281 : vector<32x128xf32>
    %283 = arith.addf %271, %282 : vector<32x128xf32>
    %c23 = arith.constant 23 : index
    %284 = memref.load %arg1[%c23] : memref<50xf32, #tpu.memory_space<smem>>
    %285 = vector.broadcast %284 : f32 to vector<32x128xf32>
    %286 = arith.mulf %6, %285 : vector<32x128xf32>
    %c23_72 = arith.constant 23 : index
    %287 = memref.load %arg2[%c23_72] : memref<50xf32, #tpu.memory_space<smem>>
    %288 = vector.broadcast %287 : f32 to vector<32x128xf32>
    %289 = arith.addf %286, %288 : vector<32x128xf32>
    %cst_73 = arith.constant 0.000000e+00 : f32
    %290 = vector.broadcast %cst_73 : f32 to vector<32x128xf32>
    %291 = arith.maximumf %289, %290 : vector<32x128xf32>
    %c23_74 = arith.constant 23 : index
    %292 = memref.load %arg3[%c23_74] : memref<50xf32, #tpu.memory_space<smem>>
    %293 = vector.broadcast %292 : f32 to vector<32x128xf32>
    %294 = arith.mulf %291, %293 : vector<32x128xf32>
    %295 = arith.addf %283, %294 : vector<32x128xf32>
    %c24 = arith.constant 24 : index
    %296 = memref.load %arg1[%c24] : memref<50xf32, #tpu.memory_space<smem>>
    %297 = vector.broadcast %296 : f32 to vector<32x128xf32>
    %298 = arith.mulf %6, %297 : vector<32x128xf32>
    %c24_75 = arith.constant 24 : index
    %299 = memref.load %arg2[%c24_75] : memref<50xf32, #tpu.memory_space<smem>>
    %300 = vector.broadcast %299 : f32 to vector<32x128xf32>
    %301 = arith.addf %298, %300 : vector<32x128xf32>
    %cst_76 = arith.constant 0.000000e+00 : f32
    %302 = vector.broadcast %cst_76 : f32 to vector<32x128xf32>
    %303 = arith.maximumf %301, %302 : vector<32x128xf32>
    %c24_77 = arith.constant 24 : index
    %304 = memref.load %arg3[%c24_77] : memref<50xf32, #tpu.memory_space<smem>>
    %305 = vector.broadcast %304 : f32 to vector<32x128xf32>
    %306 = arith.mulf %303, %305 : vector<32x128xf32>
    %307 = arith.addf %295, %306 : vector<32x128xf32>
    %c25 = arith.constant 25 : index
    %308 = memref.load %arg1[%c25] : memref<50xf32, #tpu.memory_space<smem>>
    %309 = vector.broadcast %308 : f32 to vector<32x128xf32>
    %310 = arith.mulf %6, %309 : vector<32x128xf32>
    %c25_78 = arith.constant 25 : index
    %311 = memref.load %arg2[%c25_78] : memref<50xf32, #tpu.memory_space<smem>>
    %312 = vector.broadcast %311 : f32 to vector<32x128xf32>
    %313 = arith.addf %310, %312 : vector<32x128xf32>
    %cst_79 = arith.constant 0.000000e+00 : f32
    %314 = vector.broadcast %cst_79 : f32 to vector<32x128xf32>
    %315 = arith.maximumf %313, %314 : vector<32x128xf32>
    %c25_80 = arith.constant 25 : index
    %316 = memref.load %arg3[%c25_80] : memref<50xf32, #tpu.memory_space<smem>>
    %317 = vector.broadcast %316 : f32 to vector<32x128xf32>
    %318 = arith.mulf %315, %317 : vector<32x128xf32>
    %319 = arith.addf %307, %318 : vector<32x128xf32>
    %c26 = arith.constant 26 : index
    %320 = memref.load %arg1[%c26] : memref<50xf32, #tpu.memory_space<smem>>
    %321 = vector.broadcast %320 : f32 to vector<32x128xf32>
    %322 = arith.mulf %6, %321 : vector<32x128xf32>
    %c26_81 = arith.constant 26 : index
    %323 = memref.load %arg2[%c26_81] : memref<50xf32, #tpu.memory_space<smem>>
    %324 = vector.broadcast %323 : f32 to vector<32x128xf32>
    %325 = arith.addf %322, %324 : vector<32x128xf32>
    %cst_82 = arith.constant 0.000000e+00 : f32
    %326 = vector.broadcast %cst_82 : f32 to vector<32x128xf32>
    %327 = arith.maximumf %325, %326 : vector<32x128xf32>
    %c26_83 = arith.constant 26 : index
    %328 = memref.load %arg3[%c26_83] : memref<50xf32, #tpu.memory_space<smem>>
    %329 = vector.broadcast %328 : f32 to vector<32x128xf32>
    %330 = arith.mulf %327, %329 : vector<32x128xf32>
    %331 = arith.addf %319, %330 : vector<32x128xf32>
    %c27 = arith.constant 27 : index
    %332 = memref.load %arg1[%c27] : memref<50xf32, #tpu.memory_space<smem>>
    %333 = vector.broadcast %332 : f32 to vector<32x128xf32>
    %334 = arith.mulf %6, %333 : vector<32x128xf32>
    %c27_84 = arith.constant 27 : index
    %335 = memref.load %arg2[%c27_84] : memref<50xf32, #tpu.memory_space<smem>>
    %336 = vector.broadcast %335 : f32 to vector<32x128xf32>
    %337 = arith.addf %334, %336 : vector<32x128xf32>
    %cst_85 = arith.constant 0.000000e+00 : f32
    %338 = vector.broadcast %cst_85 : f32 to vector<32x128xf32>
    %339 = arith.maximumf %337, %338 : vector<32x128xf32>
    %c27_86 = arith.constant 27 : index
    %340 = memref.load %arg3[%c27_86] : memref<50xf32, #tpu.memory_space<smem>>
    %341 = vector.broadcast %340 : f32 to vector<32x128xf32>
    %342 = arith.mulf %339, %341 : vector<32x128xf32>
    %343 = arith.addf %331, %342 : vector<32x128xf32>
    %c28 = arith.constant 28 : index
    %344 = memref.load %arg1[%c28] : memref<50xf32, #tpu.memory_space<smem>>
    %345 = vector.broadcast %344 : f32 to vector<32x128xf32>
    %346 = arith.mulf %6, %345 : vector<32x128xf32>
    %c28_87 = arith.constant 28 : index
    %347 = memref.load %arg2[%c28_87] : memref<50xf32, #tpu.memory_space<smem>>
    %348 = vector.broadcast %347 : f32 to vector<32x128xf32>
    %349 = arith.addf %346, %348 : vector<32x128xf32>
    %cst_88 = arith.constant 0.000000e+00 : f32
    %350 = vector.broadcast %cst_88 : f32 to vector<32x128xf32>
    %351 = arith.maximumf %349, %350 : vector<32x128xf32>
    %c28_89 = arith.constant 28 : index
    %352 = memref.load %arg3[%c28_89] : memref<50xf32, #tpu.memory_space<smem>>
    %353 = vector.broadcast %352 : f32 to vector<32x128xf32>
    %354 = arith.mulf %351, %353 : vector<32x128xf32>
    %355 = arith.addf %343, %354 : vector<32x128xf32>
    %c29 = arith.constant 29 : index
    %356 = memref.load %arg1[%c29] : memref<50xf32, #tpu.memory_space<smem>>
    %357 = vector.broadcast %356 : f32 to vector<32x128xf32>
    %358 = arith.mulf %6, %357 : vector<32x128xf32>
    %c29_90 = arith.constant 29 : index
    %359 = memref.load %arg2[%c29_90] : memref<50xf32, #tpu.memory_space<smem>>
    %360 = vector.broadcast %359 : f32 to vector<32x128xf32>
    %361 = arith.addf %358, %360 : vector<32x128xf32>
    %cst_91 = arith.constant 0.000000e+00 : f32
    %362 = vector.broadcast %cst_91 : f32 to vector<32x128xf32>
    %363 = arith.maximumf %361, %362 : vector<32x128xf32>
    %c29_92 = arith.constant 29 : index
    %364 = memref.load %arg3[%c29_92] : memref<50xf32, #tpu.memory_space<smem>>
    %365 = vector.broadcast %364 : f32 to vector<32x128xf32>
    %366 = arith.mulf %363, %365 : vector<32x128xf32>
    %367 = arith.addf %355, %366 : vector<32x128xf32>
    %c30 = arith.constant 30 : index
    %368 = memref.load %arg1[%c30] : memref<50xf32, #tpu.memory_space<smem>>
    %369 = vector.broadcast %368 : f32 to vector<32x128xf32>
    %370 = arith.mulf %6, %369 : vector<32x128xf32>
    %c30_93 = arith.constant 30 : index
    %371 = memref.load %arg2[%c30_93] : memref<50xf32, #tpu.memory_space<smem>>
    %372 = vector.broadcast %371 : f32 to vector<32x128xf32>
    %373 = arith.addf %370, %372 : vector<32x128xf32>
    %cst_94 = arith.constant 0.000000e+00 : f32
    %374 = vector.broadcast %cst_94 : f32 to vector<32x128xf32>
    %375 = arith.maximumf %373, %374 : vector<32x128xf32>
    %c30_95 = arith.constant 30 : index
    %376 = memref.load %arg3[%c30_95] : memref<50xf32, #tpu.memory_space<smem>>
    %377 = vector.broadcast %376 : f32 to vector<32x128xf32>
    %378 = arith.mulf %375, %377 : vector<32x128xf32>
    %379 = arith.addf %367, %378 : vector<32x128xf32>
    %c31 = arith.constant 31 : index
    %380 = memref.load %arg1[%c31] : memref<50xf32, #tpu.memory_space<smem>>
    %381 = vector.broadcast %380 : f32 to vector<32x128xf32>
    %382 = arith.mulf %6, %381 : vector<32x128xf32>
    %c31_96 = arith.constant 31 : index
    %383 = memref.load %arg2[%c31_96] : memref<50xf32, #tpu.memory_space<smem>>
    %384 = vector.broadcast %383 : f32 to vector<32x128xf32>
    %385 = arith.addf %382, %384 : vector<32x128xf32>
    %cst_97 = arith.constant 0.000000e+00 : f32
    %386 = vector.broadcast %cst_97 : f32 to vector<32x128xf32>
    %387 = arith.maximumf %385, %386 : vector<32x128xf32>
    %c31_98 = arith.constant 31 : index
    %388 = memref.load %arg3[%c31_98] : memref<50xf32, #tpu.memory_space<smem>>
    %389 = vector.broadcast %388 : f32 to vector<32x128xf32>
    %390 = arith.mulf %387, %389 : vector<32x128xf32>
    %391 = arith.addf %379, %390 : vector<32x128xf32>
    %c32 = arith.constant 32 : index
    %392 = memref.load %arg1[%c32] : memref<50xf32, #tpu.memory_space<smem>>
    %393 = vector.broadcast %392 : f32 to vector<32x128xf32>
    %394 = arith.mulf %6, %393 : vector<32x128xf32>
    %c32_99 = arith.constant 32 : index
    %395 = memref.load %arg2[%c32_99] : memref<50xf32, #tpu.memory_space<smem>>
    %396 = vector.broadcast %395 : f32 to vector<32x128xf32>
    %397 = arith.addf %394, %396 : vector<32x128xf32>
    %cst_100 = arith.constant 0.000000e+00 : f32
    %398 = vector.broadcast %cst_100 : f32 to vector<32x128xf32>
    %399 = arith.maximumf %397, %398 : vector<32x128xf32>
    %c32_101 = arith.constant 32 : index
    %400 = memref.load %arg3[%c32_101] : memref<50xf32, #tpu.memory_space<smem>>
    %401 = vector.broadcast %400 : f32 to vector<32x128xf32>
    %402 = arith.mulf %399, %401 : vector<32x128xf32>
    %403 = arith.addf %391, %402 : vector<32x128xf32>
    %c33 = arith.constant 33 : index
    %404 = memref.load %arg1[%c33] : memref<50xf32, #tpu.memory_space<smem>>
    %405 = vector.broadcast %404 : f32 to vector<32x128xf32>
    %406 = arith.mulf %6, %405 : vector<32x128xf32>
    %c33_102 = arith.constant 33 : index
    %407 = memref.load %arg2[%c33_102] : memref<50xf32, #tpu.memory_space<smem>>
    %408 = vector.broadcast %407 : f32 to vector<32x128xf32>
    %409 = arith.addf %406, %408 : vector<32x128xf32>
    %cst_103 = arith.constant 0.000000e+00 : f32
    %410 = vector.broadcast %cst_103 : f32 to vector<32x128xf32>
    %411 = arith.maximumf %409, %410 : vector<32x128xf32>
    %c33_104 = arith.constant 33 : index
    %412 = memref.load %arg3[%c33_104] : memref<50xf32, #tpu.memory_space<smem>>
    %413 = vector.broadcast %412 : f32 to vector<32x128xf32>
    %414 = arith.mulf %411, %413 : vector<32x128xf32>
    %415 = arith.addf %403, %414 : vector<32x128xf32>
    %c34 = arith.constant 34 : index
    %416 = memref.load %arg1[%c34] : memref<50xf32, #tpu.memory_space<smem>>
    %417 = vector.broadcast %416 : f32 to vector<32x128xf32>
    %418 = arith.mulf %6, %417 : vector<32x128xf32>
    %c34_105 = arith.constant 34 : index
    %419 = memref.load %arg2[%c34_105] : memref<50xf32, #tpu.memory_space<smem>>
    %420 = vector.broadcast %419 : f32 to vector<32x128xf32>
    %421 = arith.addf %418, %420 : vector<32x128xf32>
    %cst_106 = arith.constant 0.000000e+00 : f32
    %422 = vector.broadcast %cst_106 : f32 to vector<32x128xf32>
    %423 = arith.maximumf %421, %422 : vector<32x128xf32>
    %c34_107 = arith.constant 34 : index
    %424 = memref.load %arg3[%c34_107] : memref<50xf32, #tpu.memory_space<smem>>
    %425 = vector.broadcast %424 : f32 to vector<32x128xf32>
    %426 = arith.mulf %423, %425 : vector<32x128xf32>
    %427 = arith.addf %415, %426 : vector<32x128xf32>
    %c35 = arith.constant 35 : index
    %428 = memref.load %arg1[%c35] : memref<50xf32, #tpu.memory_space<smem>>
    %429 = vector.broadcast %428 : f32 to vector<32x128xf32>
    %430 = arith.mulf %6, %429 : vector<32x128xf32>
    %c35_108 = arith.constant 35 : index
    %431 = memref.load %arg2[%c35_108] : memref<50xf32, #tpu.memory_space<smem>>
    %432 = vector.broadcast %431 : f32 to vector<32x128xf32>
    %433 = arith.addf %430, %432 : vector<32x128xf32>
    %cst_109 = arith.constant 0.000000e+00 : f32
    %434 = vector.broadcast %cst_109 : f32 to vector<32x128xf32>
    %435 = arith.maximumf %433, %434 : vector<32x128xf32>
    %c35_110 = arith.constant 35 : index
    %436 = memref.load %arg3[%c35_110] : memref<50xf32, #tpu.memory_space<smem>>
    %437 = vector.broadcast %436 : f32 to vector<32x128xf32>
    %438 = arith.mulf %435, %437 : vector<32x128xf32>
    %439 = arith.addf %427, %438 : vector<32x128xf32>
    %c36 = arith.constant 36 : index
    %440 = memref.load %arg1[%c36] : memref<50xf32, #tpu.memory_space<smem>>
    %441 = vector.broadcast %440 : f32 to vector<32x128xf32>
    %442 = arith.mulf %6, %441 : vector<32x128xf32>
    %c36_111 = arith.constant 36 : index
    %443 = memref.load %arg2[%c36_111] : memref<50xf32, #tpu.memory_space<smem>>
    %444 = vector.broadcast %443 : f32 to vector<32x128xf32>
    %445 = arith.addf %442, %444 : vector<32x128xf32>
    %cst_112 = arith.constant 0.000000e+00 : f32
    %446 = vector.broadcast %cst_112 : f32 to vector<32x128xf32>
    %447 = arith.maximumf %445, %446 : vector<32x128xf32>
    %c36_113 = arith.constant 36 : index
    %448 = memref.load %arg3[%c36_113] : memref<50xf32, #tpu.memory_space<smem>>
    %449 = vector.broadcast %448 : f32 to vector<32x128xf32>
    %450 = arith.mulf %447, %449 : vector<32x128xf32>
    %451 = arith.addf %439, %450 : vector<32x128xf32>
    %c37 = arith.constant 37 : index
    %452 = memref.load %arg1[%c37] : memref<50xf32, #tpu.memory_space<smem>>
    %453 = vector.broadcast %452 : f32 to vector<32x128xf32>
    %454 = arith.mulf %6, %453 : vector<32x128xf32>
    %c37_114 = arith.constant 37 : index
    %455 = memref.load %arg2[%c37_114] : memref<50xf32, #tpu.memory_space<smem>>
    %456 = vector.broadcast %455 : f32 to vector<32x128xf32>
    %457 = arith.addf %454, %456 : vector<32x128xf32>
    %cst_115 = arith.constant 0.000000e+00 : f32
    %458 = vector.broadcast %cst_115 : f32 to vector<32x128xf32>
    %459 = arith.maximumf %457, %458 : vector<32x128xf32>
    %c37_116 = arith.constant 37 : index
    %460 = memref.load %arg3[%c37_116] : memref<50xf32, #tpu.memory_space<smem>>
    %461 = vector.broadcast %460 : f32 to vector<32x128xf32>
    %462 = arith.mulf %459, %461 : vector<32x128xf32>
    %463 = arith.addf %451, %462 : vector<32x128xf32>
    %c38 = arith.constant 38 : index
    %464 = memref.load %arg1[%c38] : memref<50xf32, #tpu.memory_space<smem>>
    %465 = vector.broadcast %464 : f32 to vector<32x128xf32>
    %466 = arith.mulf %6, %465 : vector<32x128xf32>
    %c38_117 = arith.constant 38 : index
    %467 = memref.load %arg2[%c38_117] : memref<50xf32, #tpu.memory_space<smem>>
    %468 = vector.broadcast %467 : f32 to vector<32x128xf32>
    %469 = arith.addf %466, %468 : vector<32x128xf32>
    %cst_118 = arith.constant 0.000000e+00 : f32
    %470 = vector.broadcast %cst_118 : f32 to vector<32x128xf32>
    %471 = arith.maximumf %469, %470 : vector<32x128xf32>
    %c38_119 = arith.constant 38 : index
    %472 = memref.load %arg3[%c38_119] : memref<50xf32, #tpu.memory_space<smem>>
    %473 = vector.broadcast %472 : f32 to vector<32x128xf32>
    %474 = arith.mulf %471, %473 : vector<32x128xf32>
    %475 = arith.addf %463, %474 : vector<32x128xf32>
    %c39 = arith.constant 39 : index
    %476 = memref.load %arg1[%c39] : memref<50xf32, #tpu.memory_space<smem>>
    %477 = vector.broadcast %476 : f32 to vector<32x128xf32>
    %478 = arith.mulf %6, %477 : vector<32x128xf32>
    %c39_120 = arith.constant 39 : index
    %479 = memref.load %arg2[%c39_120] : memref<50xf32, #tpu.memory_space<smem>>
    %480 = vector.broadcast %479 : f32 to vector<32x128xf32>
    %481 = arith.addf %478, %480 : vector<32x128xf32>
    %cst_121 = arith.constant 0.000000e+00 : f32
    %482 = vector.broadcast %cst_121 : f32 to vector<32x128xf32>
    %483 = arith.maximumf %481, %482 : vector<32x128xf32>
    %c39_122 = arith.constant 39 : index
    %484 = memref.load %arg3[%c39_122] : memref<50xf32, #tpu.memory_space<smem>>
    %485 = vector.broadcast %484 : f32 to vector<32x128xf32>
    %486 = arith.mulf %483, %485 : vector<32x128xf32>
    %487 = arith.addf %475, %486 : vector<32x128xf32>
    %c40 = arith.constant 40 : index
    %488 = memref.load %arg1[%c40] : memref<50xf32, #tpu.memory_space<smem>>
    %489 = vector.broadcast %488 : f32 to vector<32x128xf32>
    %490 = arith.mulf %6, %489 : vector<32x128xf32>
    %c40_123 = arith.constant 40 : index
    %491 = memref.load %arg2[%c40_123] : memref<50xf32, #tpu.memory_space<smem>>
    %492 = vector.broadcast %491 : f32 to vector<32x128xf32>
    %493 = arith.addf %490, %492 : vector<32x128xf32>
    %cst_124 = arith.constant 0.000000e+00 : f32
    %494 = vector.broadcast %cst_124 : f32 to vector<32x128xf32>
    %495 = arith.maximumf %493, %494 : vector<32x128xf32>
    %c40_125 = arith.constant 40 : index
    %496 = memref.load %arg3[%c40_125] : memref<50xf32, #tpu.memory_space<smem>>
    %497 = vector.broadcast %496 : f32 to vector<32x128xf32>
    %498 = arith.mulf %495, %497 : vector<32x128xf32>
    %499 = arith.addf %487, %498 : vector<32x128xf32>
    %c41 = arith.constant 41 : index
    %500 = memref.load %arg1[%c41] : memref<50xf32, #tpu.memory_space<smem>>
    %501 = vector.broadcast %500 : f32 to vector<32x128xf32>
    %502 = arith.mulf %6, %501 : vector<32x128xf32>
    %c41_126 = arith.constant 41 : index
    %503 = memref.load %arg2[%c41_126] : memref<50xf32, #tpu.memory_space<smem>>
    %504 = vector.broadcast %503 : f32 to vector<32x128xf32>
    %505 = arith.addf %502, %504 : vector<32x128xf32>
    %cst_127 = arith.constant 0.000000e+00 : f32
    %506 = vector.broadcast %cst_127 : f32 to vector<32x128xf32>
    %507 = arith.maximumf %505, %506 : vector<32x128xf32>
    %c41_128 = arith.constant 41 : index
    %508 = memref.load %arg3[%c41_128] : memref<50xf32, #tpu.memory_space<smem>>
    %509 = vector.broadcast %508 : f32 to vector<32x128xf32>
    %510 = arith.mulf %507, %509 : vector<32x128xf32>
    %511 = arith.addf %499, %510 : vector<32x128xf32>
    %c42 = arith.constant 42 : index
    %512 = memref.load %arg1[%c42] : memref<50xf32, #tpu.memory_space<smem>>
    %513 = vector.broadcast %512 : f32 to vector<32x128xf32>
    %514 = arith.mulf %6, %513 : vector<32x128xf32>
    %c42_129 = arith.constant 42 : index
    %515 = memref.load %arg2[%c42_129] : memref<50xf32, #tpu.memory_space<smem>>
    %516 = vector.broadcast %515 : f32 to vector<32x128xf32>
    %517 = arith.addf %514, %516 : vector<32x128xf32>
    %cst_130 = arith.constant 0.000000e+00 : f32
    %518 = vector.broadcast %cst_130 : f32 to vector<32x128xf32>
    %519 = arith.maximumf %517, %518 : vector<32x128xf32>
    %c42_131 = arith.constant 42 : index
    %520 = memref.load %arg3[%c42_131] : memref<50xf32, #tpu.memory_space<smem>>
    %521 = vector.broadcast %520 : f32 to vector<32x128xf32>
    %522 = arith.mulf %519, %521 : vector<32x128xf32>
    %523 = arith.addf %511, %522 : vector<32x128xf32>
    %c43 = arith.constant 43 : index
    %524 = memref.load %arg1[%c43] : memref<50xf32, #tpu.memory_space<smem>>
    %525 = vector.broadcast %524 : f32 to vector<32x128xf32>
    %526 = arith.mulf %6, %525 : vector<32x128xf32>
    %c43_132 = arith.constant 43 : index
    %527 = memref.load %arg2[%c43_132] : memref<50xf32, #tpu.memory_space<smem>>
    %528 = vector.broadcast %527 : f32 to vector<32x128xf32>
    %529 = arith.addf %526, %528 : vector<32x128xf32>
    %cst_133 = arith.constant 0.000000e+00 : f32
    %530 = vector.broadcast %cst_133 : f32 to vector<32x128xf32>
    %531 = arith.maximumf %529, %530 : vector<32x128xf32>
    %c43_134 = arith.constant 43 : index
    %532 = memref.load %arg3[%c43_134] : memref<50xf32, #tpu.memory_space<smem>>
    %533 = vector.broadcast %532 : f32 to vector<32x128xf32>
    %534 = arith.mulf %531, %533 : vector<32x128xf32>
    %535 = arith.addf %523, %534 : vector<32x128xf32>
    %c44 = arith.constant 44 : index
    %536 = memref.load %arg1[%c44] : memref<50xf32, #tpu.memory_space<smem>>
    %537 = vector.broadcast %536 : f32 to vector<32x128xf32>
    %538 = arith.mulf %6, %537 : vector<32x128xf32>
    %c44_135 = arith.constant 44 : index
    %539 = memref.load %arg2[%c44_135] : memref<50xf32, #tpu.memory_space<smem>>
    %540 = vector.broadcast %539 : f32 to vector<32x128xf32>
    %541 = arith.addf %538, %540 : vector<32x128xf32>
    %cst_136 = arith.constant 0.000000e+00 : f32
    %542 = vector.broadcast %cst_136 : f32 to vector<32x128xf32>
    %543 = arith.maximumf %541, %542 : vector<32x128xf32>
    %c44_137 = arith.constant 44 : index
    %544 = memref.load %arg3[%c44_137] : memref<50xf32, #tpu.memory_space<smem>>
    %545 = vector.broadcast %544 : f32 to vector<32x128xf32>
    %546 = arith.mulf %543, %545 : vector<32x128xf32>
    %547 = arith.addf %535, %546 : vector<32x128xf32>
    %c45 = arith.constant 45 : index
    %548 = memref.load %arg1[%c45] : memref<50xf32, #tpu.memory_space<smem>>
    %549 = vector.broadcast %548 : f32 to vector<32x128xf32>
    %550 = arith.mulf %6, %549 : vector<32x128xf32>
    %c45_138 = arith.constant 45 : index
    %551 = memref.load %arg2[%c45_138] : memref<50xf32, #tpu.memory_space<smem>>
    %552 = vector.broadcast %551 : f32 to vector<32x128xf32>
    %553 = arith.addf %550, %552 : vector<32x128xf32>
    %cst_139 = arith.constant 0.000000e+00 : f32
    %554 = vector.broadcast %cst_139 : f32 to vector<32x128xf32>
    %555 = arith.maximumf %553, %554 : vector<32x128xf32>
    %c45_140 = arith.constant 45 : index
    %556 = memref.load %arg3[%c45_140] : memref<50xf32, #tpu.memory_space<smem>>
    %557 = vector.broadcast %556 : f32 to vector<32x128xf32>
    %558 = arith.mulf %555, %557 : vector<32x128xf32>
    %559 = arith.addf %547, %558 : vector<32x128xf32>
    %c46 = arith.constant 46 : index
    %560 = memref.load %arg1[%c46] : memref<50xf32, #tpu.memory_space<smem>>
    %561 = vector.broadcast %560 : f32 to vector<32x128xf32>
    %562 = arith.mulf %6, %561 : vector<32x128xf32>
    %c46_141 = arith.constant 46 : index
    %563 = memref.load %arg2[%c46_141] : memref<50xf32, #tpu.memory_space<smem>>
    %564 = vector.broadcast %563 : f32 to vector<32x128xf32>
    %565 = arith.addf %562, %564 : vector<32x128xf32>
    %cst_142 = arith.constant 0.000000e+00 : f32
    %566 = vector.broadcast %cst_142 : f32 to vector<32x128xf32>
    %567 = arith.maximumf %565, %566 : vector<32x128xf32>
    %c46_143 = arith.constant 46 : index
    %568 = memref.load %arg3[%c46_143] : memref<50xf32, #tpu.memory_space<smem>>
    %569 = vector.broadcast %568 : f32 to vector<32x128xf32>
    %570 = arith.mulf %567, %569 : vector<32x128xf32>
    %571 = arith.addf %559, %570 : vector<32x128xf32>
    %c47 = arith.constant 47 : index
    %572 = memref.load %arg1[%c47] : memref<50xf32, #tpu.memory_space<smem>>
    %573 = vector.broadcast %572 : f32 to vector<32x128xf32>
    %574 = arith.mulf %6, %573 : vector<32x128xf32>
    %c47_144 = arith.constant 47 : index
    %575 = memref.load %arg2[%c47_144] : memref<50xf32, #tpu.memory_space<smem>>
    %576 = vector.broadcast %575 : f32 to vector<32x128xf32>
    %577 = arith.addf %574, %576 : vector<32x128xf32>
    %cst_145 = arith.constant 0.000000e+00 : f32
    %578 = vector.broadcast %cst_145 : f32 to vector<32x128xf32>
    %579 = arith.maximumf %577, %578 : vector<32x128xf32>
    %c47_146 = arith.constant 47 : index
    %580 = memref.load %arg3[%c47_146] : memref<50xf32, #tpu.memory_space<smem>>
    %581 = vector.broadcast %580 : f32 to vector<32x128xf32>
    %582 = arith.mulf %579, %581 : vector<32x128xf32>
    %583 = arith.addf %571, %582 : vector<32x128xf32>
    %c48 = arith.constant 48 : index
    %584 = memref.load %arg1[%c48] : memref<50xf32, #tpu.memory_space<smem>>
    %585 = vector.broadcast %584 : f32 to vector<32x128xf32>
    %586 = arith.mulf %6, %585 : vector<32x128xf32>
    %c48_147 = arith.constant 48 : index
    %587 = memref.load %arg2[%c48_147] : memref<50xf32, #tpu.memory_space<smem>>
    %588 = vector.broadcast %587 : f32 to vector<32x128xf32>
    %589 = arith.addf %586, %588 : vector<32x128xf32>
    %cst_148 = arith.constant 0.000000e+00 : f32
    %590 = vector.broadcast %cst_148 : f32 to vector<32x128xf32>
    %591 = arith.maximumf %589, %590 : vector<32x128xf32>
    %c48_149 = arith.constant 48 : index
    %592 = memref.load %arg3[%c48_149] : memref<50xf32, #tpu.memory_space<smem>>
    %593 = vector.broadcast %592 : f32 to vector<32x128xf32>
    %594 = arith.mulf %591, %593 : vector<32x128xf32>
    %595 = arith.addf %583, %594 : vector<32x128xf32>
    %c49 = arith.constant 49 : index
    %596 = memref.load %arg1[%c49] : memref<50xf32, #tpu.memory_space<smem>>
    %597 = vector.broadcast %596 : f32 to vector<32x128xf32>
    %598 = arith.mulf %6, %597 : vector<32x128xf32>
    %c49_150 = arith.constant 49 : index
    %599 = memref.load %arg2[%c49_150] : memref<50xf32, #tpu.memory_space<smem>>
    %600 = vector.broadcast %599 : f32 to vector<32x128xf32>
    %601 = arith.addf %598, %600 : vector<32x128xf32>
    %cst_151 = arith.constant 0.000000e+00 : f32
    %602 = vector.broadcast %cst_151 : f32 to vector<32x128xf32>
    %603 = arith.maximumf %601, %602 : vector<32x128xf32>
    %c49_152 = arith.constant 49 : index
    %604 = memref.load %arg3[%c49_152] : memref<50xf32, #tpu.memory_space<smem>>
    %605 = vector.broadcast %604 : f32 to vector<32x128xf32>
    %606 = arith.mulf %603, %605 : vector<32x128xf32>
    %607 = arith.addf %595, %606 : vector<32x128xf32>
    %608 = vector.broadcast %0 : f32 to vector<32x128xf32>
    %609 = arith.addf %607, %608 : vector<32x128xf32>
    %610 = arith.index_cast %4 : i32 to index
    %c0_153 = arith.constant 0 : index
    %611 = vector.load %arg6[%610, %c0_153] : memref<32x128xf32, #tpu.memory_space<vmem>>, vector<32x128xf32>
    tpu.vector_store %arg6[%610, %c0_153], %609 {strides = array<i32>} : memref<32x128xf32, #tpu.memory_space<vmem>>, vector<32x128xf32>,
    %c1_i32_154 = arith.constant 1 : i32
    return
  }
  func.func @transform_0(%arg0: i32) -> i32 {
    %c0_i32 = arith.constant 0 : i32
    %c0_i32_0 = arith.constant 0 : i32
    return %c0_i32 : i32
  }
  func.func @transform_1(%arg0: i32) -> i32 {
    %c0_i32 = arith.constant 0 : i32
    %c0_i32_0 = arith.constant 0 : i32
    return %c0_i32 : i32
  }
  func.func @transform_2(%arg0: i32) -> i32 {
    %c0_i32 = arith.constant 0 : i32
    %c0_i32_0 = arith.constant 0 : i32
    return %c0_i32 : i32
  }
  func.func @transform_3(%arg0: i32) -> i32 {
    %c0_i32 = arith.constant 0 : i32
    %c0_i32_0 = arith.constant 0 : i32
    return %c0_i32 : i32
  }
  func.func @transform_4(%arg0: i32) -> (i32, i32) {
    %c0_i32 = arith.constant 0 : i32
    %c0_i32_0 = arith.constant 0 : i32
    return %arg0, %c0_i32 : i32, i32
  }
  func.func @transform_5(%arg0: i32) -> (i32, i32) {
    %c0_i32 = arith.constant 0 : i32
    %c0_i32_0 = arith.constant 0 : i32
    return %arg0, %c0_i32 : i32, i32
  }
}

</mosaic_0001>

<llo_original>
// kernel: one_model_forward.1
$region0: #{one_model_forward.1}
  #allocation0 [shape = 'u32[]', space=smem, size = 0x4, offset = 0x4, fixed_abs, tag = 'smem constant byte address 0x4 - core index']
  #allocation1 [shape = 'u32[144,128]{1,0:T(1,128)}', space=vmem, size = 0x12000, scoped, tag = 'internal scratch']
  #allocation2 [shape = 'f32[1]{0:T(128)S(6)}', space=smem, size = 0x200, scoped, tag = 'scoped memory for one_model_forward.1']
  %s0 = inlined_call_operand.vmem [shape: f32[50], index: 0, kind: input, shape index: {}]
  %s1 = inlined_call_operand.vmem [shape: f32[50], index: 1, kind: input, shape index: {}]
  %s2 = inlined_call_operand.vmem [shape: f32[50], index: 2, kind: input, shape index: {}]
  %s3 = inlined_call_operand.<no memory space> [shape: f32[1], index: 3, kind: input, shape index: {}]
  %s4 = inlined_call_operand.vmem [shape: f32[32,128], index: 4, kind: input, shape index: {}]
  %s5 = inlined_call_operand.vmem [shape: f32[32,128], index: 5, kind: output, shape index: {}]
  %s6 = sld [smem:[#allocation0]]
  $region42: #{one_model_forward.1} parent=0
    _
  %s8 = ssub.s32 1, %s6
  %s9 = scalar_select 0, %s8, %s6
  %10 = sst [smem:[#allocation2]] %s3
  $region1: #{one_model_forward.1} parent=0
    #allocation3 [shape = 'u8[512]{0}', space=smem, size = 0x200, scoped, tag = 'input window, operand 0, single buffered']
    #allocation4 [shape = 's32[1]{0}', space=sflag, size = 0x4, scoped, tag = 'scoped memory for one_model_forward.1']
    #allocation5 [shape = 'u8[512]{0}', space=smem, size = 0x200, scoped, tag = 'input window, operand 1, single buffered']
    #allocation6 [shape = 's32[1]{0}', space=sflag, size = 0x4, scoped, tag = 'scoped memory for one_model_forward.1']
    #allocation7 [shape = 'u8[512]{0}', space=smem, size = 0x200, scoped, tag = 'input window, operand 2, single buffered']
    %11 = vsyncpa [#allocation4], 0
    %12 = vsyncpa [#allocation6], 0
    // Predicated region
    $region2: #{one_model_forward.1} parent=1 // pred_check
      _
    $region3: #{one_model_forward.1} parent=1 // pred_check_branch
      %14 = sbr.rel (0) target = $region5
    $region4: #{one_model_forward.1} parent=1 // pred_region
      %s16 = ssub.s32 16, 16
      %17 = vsyncadd [#allocation4], %s16
      %s19 = sshll.u32 %s0, 4
      %s20 = int_to_ptr.vmem [resolvable:$true] %s19
      %22 = dma.vmem_to_smem %s20, 16, [#allocation3], [#allocation4]
    $region5: #{one_model_forward.1} parent=1 // pred_fallthru
      _
    // Predicated region
    $region6: #{one_model_forward.1} parent=1 // pred_check
      _
    $region7: #{one_model_forward.1} parent=1 // pred_check_branch
      %24 = sbr.rel (0) target = $region9
    $region8: #{one_model_forward.1} parent=1 // pred_region
      %s26 = ssub.s32 16, 16
      %27 = vsyncadd [#allocation6], %s26
      %s29 = sshll.u32 %s1, 4
      %s30 = int_to_ptr.vmem [resolvable:$true] %s29
      %32 = dma.vmem_to_smem %s30, 16, [#allocation5], [#allocation6]
    $region9: #{one_model_forward.1} parent=1 // pred_fallthru
      _
    // Predicated region
    $region10: #{one_model_forward.1} parent=1 // pred_check
      _
    $region11: #{one_model_forward.1} parent=1 // pred_check_branch
      %34 = sbr.rel (0) target = $region13
    $region12: #{one_model_forward.1} parent=1 // pred_region
      %s36 = ssub.s32 16, 16
      %37 = vsyncadd [#allocation6], %s36
      %s39 = sshll.u32 %s2, 4
      %s40 = int_to_ptr.vmem [resolvable:$true] %s39
      %42 = dma.vmem_to_smem %s40, 16, [#allocation7], [#allocation6]
    $region13: #{one_model_forward.1} parent=1 // pred_fallthru
      _
    // Predicated region
    $region14: #{one_model_forward.1} parent=1 // pred_check
      _
    $region15: #{one_model_forward.1} parent=1 // pred_check_branch
      %44 = sbr.rel (0) target = $region17
    $region16: #{one_model_forward.1} parent=1 // pred_region
      _
    $region17: #{one_model_forward.1} parent=1 // pred_fallthru
      _
    // Predicated region
    $region18: #{one_model_forward.1} parent=1 // pred_check
      _
    $region19: #{one_model_forward.1} parent=1 // pred_check_branch
      %46 = sbr.rel (0) target = $region21
    $region20: #{one_model_forward.1} parent=1 // pred_region
      _
    $region21: #{one_model_forward.1} parent=1 // pred_fallthru
      _
    // Predicated region
    $region22: #{one_model_forward.1} parent=1 // pred_check
      _
    $region23: #{one_model_forward.1} parent=1 // pred_check_branch
      %48 = sbr.rel (0) target = $region25
    $region24: #{one_model_forward.1} parent=1 // pred_region
      %49 = dma.done [#allocation4], 16
    $region25: #{one_model_forward.1} parent=1 // pred_fallthru
      _
    // Predicated region
    $region26: #{one_model_forward.1} parent=1 // pred_check
      _
    $region27: #{one_model_forward.1} parent=1 // pred_check_branch
      %51 = sbr.rel (0) target = $region29
    $region28: #{one_model_forward.1} parent=1 // pred_region
      %52 = dma.done [#allocation6], 16
    $region29: #{one_model_forward.1} parent=1 // pred_fallthru
      _
    // Predicated region
    $region30: #{one_model_forward.1} parent=1 // pred_check
      _
    $region31: #{one_model_forward.1} parent=1 // pred_check_branch
      %54 = sbr.rel (0) target = $region33
    $region32: #{one_model_forward.1} parent=1 // pred_region
      %55 = dma.done [#allocation6], 16
    $region33: #{one_model_forward.1} parent=1 // pred_fallthru
      _
    %56 = sfence
    %s57 = sld [smem:[#allocation2]]
    %v58 = vld [vmem:[%s4] sm:$0xff]
    %v59 = vld [vmem:[%s4 + $0x8] sm:$0xff]
    %v60 = vld [vmem:[%s4 + $0x10] sm:$0xff]
    %v61 = vld [vmem:[%s4 + $0x18] sm:$0xff]
    %s62 = sld [smem:[#allocation3]]
    %v63 = vstv %s62
    %v64 = vmul.f32 %v58, %v63
    %v65 = vmul.f32 %v59, %v63
    %v66 = vmul.f32 %v60, %v63
    %v67 = vmul.f32 %v61, %v63
    %s68 = sld [smem:[#allocation5]]
    %v69 = vstv %s68
    %v70 = vadd.f32 %v64, %v69
    %v71 = vadd.f32 %v65, %v69
    %v72 = vadd.f32 %v66, %v69
    %v73 = vadd.f32 %v67, %v69
    %v74 = vmax.f32 %v70, 0.0
    %v75 = vmax.f32 %v71, 0.0
    %v76 = vmax.f32 %v72, 0.0
    %v77 = vmax.f32 %v73, 0.0
    %s78 = sld [smem:[#allocation7]]
    %v79 = vstv %s78
    %v80 = vmul.f32 %v74, %v79
    %v81 = vmul.f32 %v75, %v79
    %v82 = vmul.f32 %v76, %v79
    %v83 = vmul.f32 %v77, %v79
    %v84 = vadd.f32 %v80, 0.0
    %v85 = vadd.f32 %v81, 0.0
    %v86 = vadd.f32 %v82, 0.0
    %v87 = vadd.f32 %v83, 0.0
    %s88 = sld [smem:[#allocation3 + $0x1]]
    %v89 = vstv %s88
    %v90 = vmul.f32 %v58, %v89
    %v91 = vmul.f32 %v59, %v89
    %v92 = vmul.f32 %v60, %v89
    %v93 = vmul.f32 %v61, %v89
    %s94 = sld [smem:[#allocation5 + $0x1]]
    %v95 = vstv %s94
    %v96 = vadd.f32 %v90, %v95
    %v97 = vadd.f32 %v91, %v95
    %v98 = vadd.f32 %v92, %v95
    %v99 = vadd.f32 %v93, %v95
    %v100 = vmax.f32 %v96, 0.0
    %v101 = vmax.f32 %v97, 0.0
    %v102 = vmax.f32 %v98, 0.0
    %v103 = vmax.f32 %v99, 0.0
    %s104 = sld [smem:[#allocation7 + $0x1]]
    %v105 = vstv %s104
    %v106 = vmul.f32 %v100, %v105
    %v107 = vmul.f32 %v101, %v105
    %v108 = vmul.f32 %v102, %v105
    %v109 = vmul.f32 %v103, %v105
    %v110 = vadd.f32 %v84, %v106
    %v111 = vadd.f32 %v85, %v107
    %v112 = vadd.f32 %v86, %v108
    %v113 = vadd.f32 %v87, %v109
    %s114 = sld [smem:[#allocation3 + $0x2]]
    %v115 = vstv %s114
    %v116 = vmul.f32 %v58, %v115
    %v117 = vmul.f32 %v59, %v115
    %v118 = vmul.f32 %v60, %v115
    %v119 = vmul.f32 %v61, %v115
    %s120 = sld [smem:[#allocation5 + $0x2]]
    %v121 = vstv %s120
    %v122 = vadd.f32 %v116, %v121
    %v123 = vadd.f32 %v117, %v121
    %v124 = vadd.f32 %v118, %v121
    %v125 = vadd.f32 %v119, %v121
    %v126 = vmax.f32 %v122, 0.0
    %v127 = vmax.f32 %v123, 0.0
    %v128 = vmax.f32 %v124, 0.0
    %v129 = vmax.f32 %v125, 0.0
    %s130 = sld [smem:[#allocation7 + $0x2]]
    %v131 = vstv %s130
    %v132 = vmul.f32 %v126, %v131
    %v133 = vmul.f32 %v127, %v131
    %v134 = vmul.f32 %v128, %v131
    %v135 = vmul.f32 %v129, %v131
    %v136 = vadd.f32 %v110, %v132
    %v137 = vadd.f32 %v111, %v133
    %v138 = vadd.f32 %v112, %v134
    %v139 = vadd.f32 %v113, %v135
    %s140 = sld [smem:[#allocation3 + $0x3]]
    %v141 = vstv %s140
    %v142 = vmul.f32 %v58, %v141
    %v143 = vmul.f32 %v59, %v141
    %v144 = vmul.f32 %v60, %v141
    %v145 = vmul.f32 %v61, %v141
    %s146 = sld [smem:[#allocation5 + $0x3]]
    %v147 = vstv %s146
    %v148 = vadd.f32 %v142, %v147
    %v149 = vadd.f32 %v143, %v147
    %v150 = vadd.f32 %v144, %v147
    %v151 = vadd.f32 %v145, %v147
    %v152 = vmax.f32 %v148, 0.0
    %v153 = vmax.f32 %v149, 0.0
    %v154 = vmax.f32 %v150, 0.0
    %v155 = vmax.f32 %v151, 0.0
    %s156 = sld [smem:[#allocation7 + $0x3]]
    %v157 = vstv %s156
    %v158 = vmul.f32 %v152, %v157
    %v159 = vmul.f32 %v153, %v157
    %v160 = vmul.f32 %v154, %v157
    %v161 = vmul.f32 %v155, %v157
    %v162 = vadd.f32 %v136, %v158
    %v163 = vadd.f32 %v137, %v159
    %v164 = vadd.f32 %v138, %v160
    %v165 = vadd.f32 %v139, %v161
    %s166 = sld [smem:[#allocation3 + $0x4]]
    %v167 = vstv %s166
    %v168 = vmul.f32 %v58, %v167
    %v169 = vmul.f32 %v59, %v167
    %v170 = vmul.f32 %v60, %v167
    %v171 = vmul.f32 %v61, %v167
    %s172 = sld [smem:[#allocation5 + $0x4]]
    %v173 = vstv %s172
    %v174 = vadd.f32 %v168, %v173
    %v175 = vadd.f32 %v169, %v173
    %v176 = vadd.f32 %v170, %v173
    %v177 = vadd.f32 %v171, %v173
    %v178 = vmax.f32 %v174, 0.0
    %v179 = vmax.f32 %v175, 0.0
    %v180 = vmax.f32 %v176, 0.0
    %v181 = vmax.f32 %v177, 0.0
    %s182 = sld [smem:[#allocation7 + $0x4]]
    %v183 = vstv %s182
    %v184 = vmul.f32 %v178, %v183
    %v185 = vmul.f32 %v179, %v183
    %v186 = vmul.f32 %v180, %v183
    %v187 = vmul.f32 %v181, %v183
    %v188 = vadd.f32 %v162, %v184
    %v189 = vadd.f32 %v163, %v185
    %v190 = vadd.f32 %v164, %v186
    %v191 = vadd.f32 %v165, %v187
    %s192 = sld [smem:[#allocation3 + $0x5]]
    %v193 = vstv %s192
    %v194 = vmul.f32 %v58, %v193
    %v195 = vmul.f32 %v59, %v193
    %v196 = vmul.f32 %v60, %v193
    %v197 = vmul.f32 %v61, %v193
    %s198 = sld [smem:[#allocation5 + $0x5]]
    %v199 = vstv %s198
    %v200 = vadd.f32 %v194, %v199
    %v201 = vadd.f32 %v195, %v199
    %v202 = vadd.f32 %v196, %v199
    %v203 = vadd.f32 %v197, %v199
    %v204 = vmax.f32 %v200, 0.0
    %v205 = vmax.f32 %v201, 0.0
    %v206 = vmax.f32 %v202, 0.0
    %v207 = vmax.f32 %v203, 0.0
    %s208 = sld [smem:[#allocation7 + $0x5]]
    %v209 = vstv %s208
    %v210 = vmul.f32 %v204, %v209
    %v211 = vmul.f32 %v205, %v209
    %v212 = vmul.f32 %v206, %v209
    %v213 = vmul.f32 %v207, %v209
    %v214 = vadd.f32 %v188, %v210
    %v215 = vadd.f32 %v189, %v211
    %v216 = vadd.f32 %v190, %v212
    %v217 = vadd.f32 %v191, %v213
    %s218 = sld [smem:[#allocation3 + $0x6]]
    %v219 = vstv %s218
    %v220 = vmul.f32 %v58, %v219
    %v221 = vmul.f32 %v59, %v219
    %v222 = vmul.f32 %v60, %v219
    %v223 = vmul.f32 %v61, %v219
    %s224 = sld [smem:[#allocation5 + $0x6]]
    %v225 = vstv %s224
    %v226 = vadd.f32 %v220, %v225
    %v227 = vadd.f32 %v221, %v225
    %v228 = vadd.f32 %v222, %v225
    %v229 = vadd.f32 %v223, %v225
    %v230 = vmax.f32 %v226, 0.0
    %v231 = vmax.f32 %v227, 0.0
    %v232 = vmax.f32 %v228, 0.0
    %v233 = vmax.f32 %v229, 0.0
    %s234 = sld [smem:[#allocation7 + $0x6]]
    %v235 = vstv %s234
    %v236 = vmul.f32 %v230, %v235
    %v237 = vmul.f32 %v231, %v235
    %v238 = vmul.f32 %v232, %v235
    %v239 = vmul.f32 %v233, %v235
    %v240 = vadd.f32 %v214, %v236
    %v241 = vadd.f32 %v215, %v237
    %v242 = vadd.f32 %v216, %v238
    %v243 = vadd.f32 %v217, %v239
    %s244 = sld [smem:[#allocation3 + $0x7]]
    %v245 = vstv %s244
    %v246 = vmul.f32 %v58, %v245
    %v247 = vmul.f32 %v59, %v245
    %v248 = vmul.f32 %v60, %v245
    %v249 = vmul.f32 %v61, %v245
    %s250 = sld [smem:[#allocation5 + $0x7]]
    %v251 = vstv %s250
    %v252 = vadd.f32 %v246, %v251
    %v253 = vadd.f32 %v247, %v251
    %v254 = vadd.f32 %v248, %v251
    %v255 = vadd.f32 %v249, %v251
    %v256 = vmax.f32 %v252, 0.0
    %v257 = vmax.f32 %v253, 0.0
    %v258 = vmax.f32 %v254, 0.0
    %v259 = vmax.f32 %v255, 0.0
    %s260 = sld [smem:[#allocation7 + $0x7]]
    %v261 = vstv %s260
    %v262 = vmul.f32 %v256, %v261
    %v263 = vmul.f32 %v257, %v261
    %v264 = vmul.f32 %v258, %v261
    %v265 = vmul.f32 %v259, %v261
    %v266 = vadd.f32 %v240, %v262
    %v267 = vadd.f32 %v241, %v263
    %v268 = vadd.f32 %v242, %v264
    %v269 = vadd.f32 %v243, %v265
    %s270 = sld [smem:[#allocation3 + $0x8]]
    %v271 = vstv %s270
    %v272 = vmul.f32 %v58, %v271
    %v273 = vmul.f32 %v59, %v271
    %v274 = vmul.f32 %v60, %v271
    %v275 = vmul.f32 %v61, %v271
    %s276 = sld [smem:[#allocation5 + $0x8]]
    %v277 = vstv %s276
    %v278 = vadd.f32 %v272, %v277
    %v279 = vadd.f32 %v273, %v277
    %v280 = vadd.f32 %v274, %v277
    %v281 = vadd.f32 %v275, %v277
    %v282 = vmax.f32 %v278, 0.0
    %v283 = vmax.f32 %v279, 0.0
    %v284 = vmax.f32 %v280, 0.0
    %v285 = vmax.f32 %v281, 0.0
    %s286 = sld [smem:[#allocation7 + $0x8]]
    %v287 = vstv %s286
    %v288 = vmul.f32 %v282, %v287
    %v289 = vmul.f32 %v283, %v287
    %v290 = vmul.f32 %v284, %v287
    %v291 = vmul.f32 %v285, %v287
    %v292 = vadd.f32 %v266, %v288
    %v293 = vadd.f32 %v267, %v289
    %v294 = vadd.f32 %v268, %v290
    %v295 = vadd.f32 %v269, %v291
    %s296 = sld [smem:[#allocation3 + $0x9]]
    %v297 = vstv %s296
    %v298 = vmul.f32 %v58, %v297
    %v299 = vmul.f32 %v59, %v297
    %v300 = vmul.f32 %v60, %v297
    %v301 = vmul.f32 %v61, %v297
    %s302 = sld [smem:[#allocation5 + $0x9]]
    %v303 = vstv %s302
    %v304 = vadd.f32 %v298, %v303
    %v305 = vadd.f32 %v299, %v303
    %v306 = vadd.f32 %v300, %v303
    %v307 = vadd.f32 %v301, %v303
    %v308 = vmax.f32 %v304, 0.0
    %v309 = vmax.f32 %v305, 0.0
    %v310 = vmax.f32 %v306, 0.0
    %v311 = vmax.f32 %v307, 0.0
    %s312 = sld [smem:[#allocation7 + $0x9]]
    %v313 = vstv %s312
    %v314 = vmul.f32 %v308, %v313
    %v315 = vmul.f32 %v309, %v313
    %v316 = vmul.f32 %v310, %v313
    %v317 = vmul.f32 %v311, %v313
    %v318 = vadd.f32 %v292, %v314
    %v319 = vadd.f32 %v293, %v315
    %v320 = vadd.f32 %v294, %v316
    %v321 = vadd.f32 %v295, %v317
    %s322 = sld [smem:[#allocation3 + $0xa]]
    %v323 = vstv %s322
    %v324 = vmul.f32 %v58, %v323
    %v325 = vmul.f32 %v59, %v323
    %v326 = vmul.f32 %v60, %v323
    %v327 = vmul.f32 %v61, %v323
    %s328 = sld [smem:[#allocation5 + $0xa]]
    %v329 = vstv %s328
    %v330 = vadd.f32 %v324, %v329
    %v331 = vadd.f32 %v325, %v329
    %v332 = vadd.f32 %v326, %v329
    %v333 = vadd.f32 %v327, %v329
    %v334 = vmax.f32 %v330, 0.0
    %v335 = vmax.f32 %v331, 0.0
    %v336 = vmax.f32 %v332, 0.0
    %v337 = vmax.f32 %v333, 0.0
    %s338 = sld [smem:[#allocation7 + $0xa]]
    %v339 = vstv %s338
    %v340 = vmul.f32 %v334, %v339
    %v341 = vmul.f32 %v335, %v339
    %v342 = vmul.f32 %v336, %v339
    %v343 = vmul.f32 %v337, %v339
    %v344 = vadd.f32 %v318, %v340
    %v345 = vadd.f32 %v319, %v341
    %v346 = vadd.f32 %v320, %v342
    %v347 = vadd.f32 %v321, %v343
    %s348 = sld [smem:[#allocation3 + $0xb]]
    %v349 = vstv %s348
    %v350 = vmul.f32 %v58, %v349
    %v351 = vmul.f32 %v59, %v349
    %v352 = vmul.f32 %v60, %v349
    %v353 = vmul.f32 %v61, %v349
    %s354 = sld [smem:[#allocation5 + $0xb]]
    %v355 = vstv %s354
    %v356 = vadd.f32 %v350, %v355
    %v357 = vadd.f32 %v351, %v355
    %v358 = vadd.f32 %v352, %v355
    %v359 = vadd.f32 %v353, %v355
    %v360 = vmax.f32 %v356, 0.0
    %v361 = vmax.f32 %v357, 0.0
    %v362 = vmax.f32 %v358, 0.0
    %v363 = vmax.f32 %v359, 0.0
    %s364 = sld [smem:[#allocation7 + $0xb]]
    %v365 = vstv %s364
    %v366 = vmul.f32 %v360, %v365
    %v367 = vmul.f32 %v361, %v365
    %v368 = vmul.f32 %v362, %v365
    %v369 = vmul.f32 %v363, %v365
    %v370 = vadd.f32 %v344, %v366
    %v371 = vadd.f32 %v345, %v367
    %v372 = vadd.f32 %v346, %v368
    %v373 = vadd.f32 %v347, %v369
    %s374 = sld [smem:[#allocation3 + $0xc]]
    %v375 = vstv %s374
    %v376 = vmul.f32 %v58, %v375
    %v377 = vmul.f32 %v59, %v375
    %v378 = vmul.f32 %v60, %v375
    %v379 = vmul.f32 %v61, %v375
    %s380 = sld [smem:[#allocation5 + $0xc]]
    %v381 = vstv %s380
    %v382 = vadd.f32 %v376, %v381
    %v383 = vadd.f32 %v377, %v381
    %v384 = vadd.f32 %v378, %v381
    %v385 = vadd.f32 %v379, %v381
    %v386 = vmax.f32 %v382, 0.0
    %v387 = vmax.f32 %v383, 0.0
    %v388 = vmax.f32 %v384, 0.0
    %v389 = vmax.f32 %v385, 0.0
    %s390 = sld [smem:[#allocation7 + $0xc]]
    %v391 = vstv %s390
    %v392 = vmul.f32 %v386, %v391
    %v393 = vmul.f32 %v387, %v391
    %v394 = vmul.f32 %v388, %v391
    %v395 = vmul.f32 %v389, %v391
    %v396 = vadd.f32 %v370, %v392
    %v397 = vadd.f32 %v371, %v393
    %v398 = vadd.f32 %v372, %v394
    %v399 = vadd.f32 %v373, %v395
    %s400 = sld [smem:[#allocation3 + $0xd]]
    %v401 = vstv %s400
    %v402 = vmul.f32 %v58, %v401
    %v403 = vmul.f32 %v59, %v401
    %v404 = vmul.f32 %v60, %v401
    %v405 = vmul.f32 %v61, %v401
    %s406 = sld [smem:[#allocation5 + $0xd]]
    %v407 = vstv %s406
    %v408 = vadd.f32 %v402, %v407
    %v409 = vadd.f32 %v403, %v407
    %v410 = vadd.f32 %v404, %v407
    %v411 = vadd.f32 %v405, %v407
    %v412 = vmax.f32 %v408, 0.0
    %v413 = vmax.f32 %v409, 0.0
    %v414 = vmax.f32 %v410, 0.0
    %v415 = vmax.f32 %v411, 0.0
    %s416 = sld [smem:[#allocation7 + $0xd]]
    %v417 = vstv %s416
    %v418 = vmul.f32 %v412, %v417
    %v419 = vmul.f32 %v413, %v417
    %v420 = vmul.f32 %v414, %v417
    %v421 = vmul.f32 %v415, %v417
    %v422 = vadd.f32 %v396, %v418
    %v423 = vadd.f32 %v397, %v419
    %v424 = vadd.f32 %v398, %v420
    %v425 = vadd.f32 %v399, %v421
    %s426 = sld [smem:[#allocation3 + $0xe]]
    %v427 = vstv %s426
    %v428 = vmul.f32 %v58, %v427
    %v429 = vmul.f32 %v59, %v427
    %v430 = vmul.f32 %v60, %v427
    %v431 = vmul.f32 %v61, %v427
    %s432 = sld [smem:[#allocation5 + $0xe]]
    %v433 = vstv %s432
    %v434 = vadd.f32 %v428, %v433
    %v435 = vadd.f32 %v429, %v433
    %v436 = vadd.f32 %v430, %v433
    %v437 = vadd.f32 %v431, %v433
    %v438 = vmax.f32 %v434, 0.0
    %v439 = vmax.f32 %v435, 0.0
    %v440 = vmax.f32 %v436, 0.0
    %v441 = vmax.f32 %v437, 0.0
    %s442 = sld [smem:[#allocation7 + $0xe]]
    %v443 = vstv %s442
    %v444 = vmul.f32 %v438, %v443
    %v445 = vmul.f32 %v439, %v443
    %v446 = vmul.f32 %v440, %v443
    %v447 = vmul.f32 %v441, %v443
    %v448 = vadd.f32 %v422, %v444
    %v449 = vadd.f32 %v423, %v445
    %v450 = vadd.f32 %v424, %v446
    %v451 = vadd.f32 %v425, %v447
    %s452 = sld [smem:[#allocation3 + $0xf]]
    %v453 = vstv %s452
    %v454 = vmul.f32 %v58, %v453
    %v455 = vmul.f32 %v59, %v453
    %v456 = vmul.f32 %v60, %v453
    %v457 = vmul.f32 %v61, %v453
    %s458 = sld [smem:[#allocation5 + $0xf]]
    %v459 = vstv %s458
    %v460 = vadd.f32 %v454, %v459
    %v461 = vadd.f32 %v455, %v459
    %v462 = vadd.f32 %v456, %v459
    %v463 = vadd.f32 %v457, %v459
    %v464 = vmax.f32 %v460, 0.0
    %v465 = vmax.f32 %v461, 0.0
    %v466 = vmax.f32 %v462, 0.0
    %v467 = vmax.f32 %v463, 0.0
    %s468 = sld [smem:[#allocation7 + $0xf]]
    %v469 = vstv %s468
    %v470 = vmul.f32 %v464, %v469
    %v471 = vmul.f32 %v465, %v469
    %v472 = vmul.f32 %v466, %v469
    %v473 = vmul.f32 %v467, %v469
    %v474 = vadd.f32 %v448, %v470
    %v475 = vadd.f32 %v449, %v471
    %v476 = vadd.f32 %v450, %v472
    %v477 = vadd.f32 %v451, %v473
    %s478 = sld [smem:[#allocation3 + $0x10]]
    %v479 = vstv %s478
    %v480 = vmul.f32 %v58, %v479
    %v481 = vmul.f32 %v59, %v479
    %v482 = vmul.f32 %v60, %v479
    %v483 = vmul.f32 %v61, %v479
    %s484 = sld [smem:[#allocation5 + $0x10]]
    %v485 = vstv %s484
    %v486 = vadd.f32 %v480, %v485
    %v487 = vadd.f32 %v481, %v485
    %v488 = vadd.f32 %v482, %v485
    %v489 = vadd.f32 %v483, %v485
    %v490 = vmax.f32 %v486, 0.0
    %v491 = vmax.f32 %v487, 0.0
    %v492 = vmax.f32 %v488, 0.0
    %v493 = vmax.f32 %v489, 0.0
    %s494 = sld [smem:[#allocation7 + $0x10]]
    %v495 = vstv %s494
    %v496 = vmul.f32 %v490, %v495
    %v497 = vmul.f32 %v491, %v495
    %v498 = vmul.f32 %v492, %v495
    %v499 = vmul.f32 %v493, %v495
    %v500 = vadd.f32 %v474, %v496
    %v501 = vadd.f32 %v475, %v497
    %v502 = vadd.f32 %v476, %v498
    %v503 = vadd.f32 %v477, %v499
    %s504 = sld [smem:[#allocation3 + $0x11]]
    %v505 = vstv %s504
    %v506 = vmul.f32 %v58, %v505
    %v507 = vmul.f32 %v59, %v505
    %v508 = vmul.f32 %v60, %v505
    %v509 = vmul.f32 %v61, %v505
    %s510 = sld [smem:[#allocation5 + $0x11]]
    %v511 = vstv %s510
    %v512 = vadd.f32 %v506, %v511
    %v513 = vadd.f32 %v507, %v511
    %v514 = vadd.f32 %v508, %v511
    %v515 = vadd.f32 %v509, %v511
    %v516 = vmax.f32 %v512, 0.0
    %v517 = vmax.f32 %v513, 0.0
    %v518 = vmax.f32 %v514, 0.0
    %v519 = vmax.f32 %v515, 0.0
    %s520 = sld [smem:[#allocation7 + $0x11]]
    %v521 = vstv %s520
    %v522 = vmul.f32 %v516, %v521
    %v523 = vmul.f32 %v517, %v521
    %v524 = vmul.f32 %v518, %v521
    %v525 = vmul.f32 %v519, %v521
    %v526 = vadd.f32 %v500, %v522
    %v527 = vadd.f32 %v501, %v523
    %v528 = vadd.f32 %v502, %v524
    %v529 = vadd.f32 %v503, %v525
    %s530 = sld [smem:[#allocation3 + $0x12]]
    %v531 = vstv %s530
    %v532 = vmul.f32 %v58, %v531
    %v533 = vmul.f32 %v59, %v531
    %v534 = vmul.f32 %v60, %v531
    %v535 = vmul.f32 %v61, %v531
    %s536 = sld [smem:[#allocation5 + $0x12]]
    %v537 = vstv %s536
    %v538 = vadd.f32 %v532, %v537
    %v539 = vadd.f32 %v533, %v537
    %v540 = vadd.f32 %v534, %v537
    %v541 = vadd.f32 %v535, %v537
    %v542 = vmax.f32 %v538, 0.0
    %v543 = vmax.f32 %v539, 0.0
    %v544 = vmax.f32 %v540, 0.0
    %v545 = vmax.f32 %v541, 0.0
    %s546 = sld [smem:[#allocation7 + $0x12]]
    %v547 = vstv %s546
    %v548 = vmul.f32 %v542, %v547
    %v549 = vmul.f32 %v543, %v547
    %v550 = vmul.f32 %v544, %v547
    %v551 = vmul.f32 %v545, %v547
    %v552 = vadd.f32 %v526, %v548
    %v553 = vadd.f32 %v527, %v549
    %v554 = vadd.f32 %v528, %v550
    %v555 = vadd.f32 %v529, %v551
    %s556 = sld [smem:[#allocation3 + $0x13]]
    %v557 = vstv %s556
    %v558 = vmul.f32 %v58, %v557
    %v559 = vmul.f32 %v59, %v557
    %v560 = vmul.f32 %v60, %v557
    %v561 = vmul.f32 %v61, %v557
    %s562 = sld [smem:[#allocation5 + $0x13]]
    %v563 = vstv %s562
    %v564 = vadd.f32 %v558, %v563
    %v565 = vadd.f32 %v559, %v563
    %v566 = vadd.f32 %v560, %v563
    %v567 = vadd.f32 %v561, %v563
    %v568 = vmax.f32 %v564, 0.0
    %v569 = vmax.f32 %v565, 0.0
    %v570 = vmax.f32 %v566, 0.0
    %v571 = vmax.f32 %v567, 0.0
    %s572 = sld [smem:[#allocation7 + $0x13]]
    %v573 = vstv %s572
    %v574 = vmul.f32 %v568, %v573
    %v575 = vmul.f32 %v569, %v573
    %v576 = vmul.f32 %v570, %v573
    %v577 = vmul.f32 %v571, %v573
    %v578 = vadd.f32 %v552, %v574
    %v579 = vadd.f32 %v553, %v575
    %v580 = vadd.f32 %v554, %v576
    %v581 = vadd.f32 %v555, %v577
    %s582 = sld [smem:[#allocation3 + $0x14]]
    %v583 = vstv %s582
    %v584 = vmul.f32 %v58, %v583
    %v585 = vmul.f32 %v59, %v583
    %v586 = vmul.f32 %v60, %v583
    %v587 = vmul.f32 %v61, %v583
    %s588 = sld [smem:[#allocation5 + $0x14]]
    %v589 = vstv %s588
    %v590 = vadd.f32 %v584, %v589
    %v591 = vadd.f32 %v585, %v589
    %v592 = vadd.f32 %v586, %v589
    %v593 = vadd.f32 %v587, %v589
    %v594 = vmax.f32 %v590, 0.0
    %v595 = vmax.f32 %v591, 0.0
    %v596 = vmax.f32 %v592, 0.0
    %v597 = vmax.f32 %v593, 0.0
    %s598 = sld [smem:[#allocation7 + $0x14]]
    %v599 = vstv %s598
    %v600 = vmul.f32 %v594, %v599
    %v601 = vmul.f32 %v595, %v599
    %v602 = vmul.f32 %v596, %v599
    %v603 = vmul.f32 %v597, %v599
    %v604 = vadd.f32 %v578, %v600
    %v605 = vadd.f32 %v579, %v601
    %v606 = vadd.f32 %v580, %v602
    %v607 = vadd.f32 %v581, %v603
    %s608 = sld [smem:[#allocation3 + $0x15]]
    %v609 = vstv %s608
    %v610 = vmul.f32 %v58, %v609
    %v611 = vmul.f32 %v59, %v609
    %v612 = vmul.f32 %v60, %v609
    %v613 = vmul.f32 %v61, %v609
    %s614 = sld [smem:[#allocation5 + $0x15]]
    %v615 = vstv %s614
    %v616 = vadd.f32 %v610, %v615
    %v617 = vadd.f32 %v611, %v615
    %v618 = vadd.f32 %v612, %v615
    %v619 = vadd.f32 %v613, %v615
    %v620 = vmax.f32 %v616, 0.0
    %v621 = vmax.f32 %v617, 0.0
    %v622 = vmax.f32 %v618, 0.0
    %v623 = vmax.f32 %v619, 0.0
    %s624 = sld [smem:[#allocation7 + $0x15]]
    %v625 = vstv %s624
    %v626 = vmul.f32 %v620, %v625
    %v627 = vmul.f32 %v621, %v625
    %v628 = vmul.f32 %v622, %v625
    %v629 = vmul.f32 %v623, %v625
    %v630 = vadd.f32 %v604, %v626
    %v631 = vadd.f32 %v605, %v627
    %v632 = vadd.f32 %v606, %v628
    %v633 = vadd.f32 %v607, %v629
    %s634 = sld [smem:[#allocation3 + $0x16]]
    %v635 = vstv %s634
    %v636 = vmul.f32 %v58, %v635
    %v637 = vmul.f32 %v59, %v635
    %v638 = vmul.f32 %v60, %v635
    %v639 = vmul.f32 %v61, %v635
    %s640 = sld [smem:[#allocation5 + $0x16]]
    %v641 = vstv %s640
    %v642 = vadd.f32 %v636, %v641
    %v643 = vadd.f32 %v637, %v641
    %v644 = vadd.f32 %v638, %v641
    %v645 = vadd.f32 %v639, %v641
    %v646 = vmax.f32 %v642, 0.0
    %v647 = vmax.f32 %v643, 0.0
    %v648 = vmax.f32 %v644, 0.0
    %v649 = vmax.f32 %v645, 0.0
    %s650 = sld [smem:[#allocation7 + $0x16]]
    %v651 = vstv %s650
    %v652 = vmul.f32 %v646, %v651
    %v653 = vmul.f32 %v647, %v651
    %v654 = vmul.f32 %v648, %v651
    %v655 = vmul.f32 %v649, %v651
    %v656 = vadd.f32 %v630, %v652
    %v657 = vadd.f32 %v631, %v653
    %v658 = vadd.f32 %v632, %v654
    %v659 = vadd.f32 %v633, %v655
    %s660 = sld [smem:[#allocation3 + $0x17]]
    %v661 = vstv %s660
    %v662 = vmul.f32 %v58, %v661
    %v663 = vmul.f32 %v59, %v661
    %v664 = vmul.f32 %v60, %v661
    %v665 = vmul.f32 %v61, %v661
    %s666 = sld [smem:[#allocation5 + $0x17]]
    %v667 = vstv %s666
    %v668 = vadd.f32 %v662, %v667
    %v669 = vadd.f32 %v663, %v667
    %v670 = vadd.f32 %v664, %v667
    %v671 = vadd.f32 %v665, %v667
    %v672 = vmax.f32 %v668, 0.0
    %v673 = vmax.f32 %v669, 0.0
    %v674 = vmax.f32 %v670, 0.0
    %v675 = vmax.f32 %v671, 0.0
    %s676 = sld [smem:[#allocation7 + $0x17]]
    %v677 = vstv %s676
    %v678 = vmul.f32 %v672, %v677
    %v679 = vmul.f32 %v673, %v677
    %v680 = vmul.f32 %v674, %v677
    %v681 = vmul.f32 %v675, %v677
    %v682 = vadd.f32 %v656, %v678
    %v683 = vadd.f32 %v657, %v679
    %v684 = vadd.f32 %v658, %v680
    %v685 = vadd.f32 %v659, %v681
    %s686 = sld [smem:[#allocation3 + $0x18]]
    %v687 = vstv %s686
    %v688 = vmul.f32 %v58, %v687
    %v689 = vmul.f32 %v59, %v687
    %v690 = vmul.f32 %v60, %v687
    %v691 = vmul.f32 %v61, %v687
    %s692 = sld [smem:[#allocation5 + $0x18]]
    %v693 = vstv %s692
    %v694 = vadd.f32 %v688, %v693
    %v695 = vadd.f32 %v689, %v693
    %v696 = vadd.f32 %v690, %v693
    %v697 = vadd.f32 %v691, %v693
    %v698 = vmax.f32 %v694, 0.0
    %v699 = vmax.f32 %v695, 0.0
    %v700 = vmax.f32 %v696, 0.0
    %v701 = vmax.f32 %v697, 0.0
    %s702 = sld [smem:[#allocation7 + $0x18]]
    %v703 = vstv %s702
    %v704 = vmul.f32 %v698, %v703
    %v705 = vmul.f32 %v699, %v703
    %v706 = vmul.f32 %v700, %v703
    %v707 = vmul.f32 %v701, %v703
    %v708 = vadd.f32 %v682, %v704
    %v709 = vadd.f32 %v683, %v705
    %v710 = vadd.f32 %v684, %v706
    %v711 = vadd.f32 %v685, %v707
    %s712 = sld [smem:[#allocation3 + $0x19]]
    %v713 = vstv %s712
    %v714 = vmul.f32 %v58, %v713
    %v715 = vmul.f32 %v59, %v713
    %v716 = vmul.f32 %v60, %v713
    %v717 = vmul.f32 %v61, %v713
    %s718 = sld [smem:[#allocation5 + $0x19]]
    %v719 = vstv %s718
    %v720 = vadd.f32 %v714, %v719
    %v721 = vadd.f32 %v715, %v719
    %v722 = vadd.f32 %v716, %v719
    %v723 = vadd.f32 %v717, %v719
    %v724 = vmax.f32 %v720, 0.0
    %v725 = vmax.f32 %v721, 0.0
    %v726 = vmax.f32 %v722, 0.0
    %v727 = vmax.f32 %v723, 0.0
    %s728 = sld [smem:[#allocation7 + $0x19]]
    %v729 = vstv %s728
    %v730 = vmul.f32 %v724, %v729
    %v731 = vmul.f32 %v725, %v729
    %v732 = vmul.f32 %v726, %v729
    %v733 = vmul.f32 %v727, %v729
    %v734 = vadd.f32 %v708, %v730
    %v735 = vadd.f32 %v709, %v731
    %v736 = vadd.f32 %v710, %v732
    %v737 = vadd.f32 %v711, %v733
    %s738 = sld [smem:[#allocation3 + $0x1a]]
    %v739 = vstv %s738
    %v740 = vmul.f32 %v58, %v739
    %v741 = vmul.f32 %v59, %v739
    %v742 = vmul.f32 %v60, %v739
    %v743 = vmul.f32 %v61, %v739
    %s744 = sld [smem:[#allocation5 + $0x1a]]
    %v745 = vstv %s744
    %v746 = vadd.f32 %v740, %v745
    %v747 = vadd.f32 %v741, %v745
    %v748 = vadd.f32 %v742, %v745
    %v749 = vadd.f32 %v743, %v745
    %v750 = vmax.f32 %v746, 0.0
    %v751 = vmax.f32 %v747, 0.0
    %v752 = vmax.f32 %v748, 0.0
    %v753 = vmax.f32 %v749, 0.0
    %s754 = sld [smem:[#allocation7 + $0x1a]]
    %v755 = vstv %s754
    %v756 = vmul.f32 %v750, %v755
    %v757 = vmul.f32 %v751, %v755
    %v758 = vmul.f32 %v752, %v755
    %v759 = vmul.f32 %v753, %v755
    %v760 = vadd.f32 %v734, %v756
    %v761 = vadd.f32 %v735, %v757
    %v762 = vadd.f32 %v736, %v758
    %v763 = vadd.f32 %v737, %v759
    %s764 = sld [smem:[#allocation3 + $0x1b]]
    %v765 = vstv %s764
    %v766 = vmul.f32 %v58, %v765
    %v767 = vmul.f32 %v59, %v765
    %v768 = vmul.f32 %v60, %v765
    %v769 = vmul.f32 %v61, %v765
    %s770 = sld [smem:[#allocation5 + $0x1b]]
    %v771 = vstv %s770
    %v772 = vadd.f32 %v766, %v771
    %v773 = vadd.f32 %v767, %v771
    %v774 = vadd.f32 %v768, %v771
    %v775 = vadd.f32 %v769, %v771
    %v776 = vmax.f32 %v772, 0.0
    %v777 = vmax.f32 %v773, 0.0
    %v778 = vmax.f32 %v774, 0.0
    %v779 = vmax.f32 %v775, 0.0
    %s780 = sld [smem:[#allocation7 + $0x1b]]
    %v781 = vstv %s780
    %v782 = vmul.f32 %v776, %v781
    %v783 = vmul.f32 %v777, %v781
    %v784 = vmul.f32 %v778, %v781
    %v785 = vmul.f32 %v779, %v781
    %v786 = vadd.f32 %v760, %v782
    %v787 = vadd.f32 %v761, %v783
    %v788 = vadd.f32 %v762, %v784
    %v789 = vadd.f32 %v763, %v785
    %s790 = sld [smem:[#allocation3 + $0x1c]]
    %v791 = vstv %s790
    %v792 = vmul.f32 %v58, %v791
    %v793 = vmul.f32 %v59, %v791
    %v794 = vmul.f32 %v60, %v791
    %v795 = vmul.f32 %v61, %v791
    %s796 = sld [smem:[#allocation5 + $0x1c]]
    %v797 = vstv %s796
    %v798 = vadd.f32 %v792, %v797
    %v799 = vadd.f32 %v793, %v797
    %v800 = vadd.f32 %v794, %v797
    %v801 = vadd.f32 %v795, %v797
    %v802 = vmax.f32 %v798, 0.0
    %v803 = vmax.f32 %v799, 0.0
    %v804 = vmax.f32 %v800, 0.0
    %v805 = vmax.f32 %v801, 0.0
    %s806 = sld [smem:[#allocation7 + $0x1c]]
    %v807 = vstv %s806
    %v808 = vmul.f32 %v802, %v807
    %v809 = vmul.f32 %v803, %v807
    %v810 = vmul.f32 %v804, %v807
    %v811 = vmul.f32 %v805, %v807
    %v812 = vadd.f32 %v786, %v808
    %v813 = vadd.f32 %v787, %v809
    %v814 = vadd.f32 %v788, %v810
    %v815 = vadd.f32 %v789, %v811
    %s816 = sld [smem:[#allocation3 + $0x1d]]
    %v817 = vstv %s816
    %v818 = vmul.f32 %v58, %v817
    %v819 = vmul.f32 %v59, %v817
    %v820 = vmul.f32 %v60, %v817
    %v821 = vmul.f32 %v61, %v817
    %s822 = sld [smem:[#allocation5 + $0x1d]]
    %v823 = vstv %s822
    %v824 = vadd.f32 %v818, %v823
    %v825 = vadd.f32 %v819, %v823
    %v826 = vadd.f32 %v820, %v823
    %v827 = vadd.f32 %v821, %v823
    %v828 = vmax.f32 %v824, 0.0
    %v829 = vmax.f32 %v825, 0.0
    %v830 = vmax.f32 %v826, 0.0
    %v831 = vmax.f32 %v827, 0.0
    %s832 = sld [smem:[#allocation7 + $0x1d]]
    %v833 = vstv %s832
    %v834 = vmul.f32 %v828, %v833
    %v835 = vmul.f32 %v829, %v833
    %v836 = vmul.f32 %v830, %v833
    %v837 = vmul.f32 %v831, %v833
    %v838 = vadd.f32 %v812, %v834
    %v839 = vadd.f32 %v813, %v835
    %v840 = vadd.f32 %v814, %v836
    %v841 = vadd.f32 %v815, %v837
    %s842 = sld [smem:[#allocation3 + $0x1e]]
    %v843 = vstv %s842
    %v844 = vmul.f32 %v58, %v843
    %v845 = vmul.f32 %v59, %v843
    %v846 = vmul.f32 %v60, %v843
    %v847 = vmul.f32 %v61, %v843
    %s848 = sld [smem:[#allocation5 + $0x1e]]
    %v849 = vstv %s848
    %v850 = vadd.f32 %v844, %v849
    %v851 = vadd.f32 %v845, %v849
    %v852 = vadd.f32 %v846, %v849
    %v853 = vadd.f32 %v847, %v849
    %v854 = vmax.f32 %v850, 0.0
    %v855 = vmax.f32 %v851, 0.0
    %v856 = vmax.f32 %v852, 0.0
    %v857 = vmax.f32 %v853, 0.0
    %s858 = sld [smem:[#allocation7 + $0x1e]]
    %v859 = vstv %s858
    %v860 = vmul.f32 %v854, %v859
    %v861 = vmul.f32 %v855, %v859
    %v862 = vmul.f32 %v856, %v859
    %v863 = vmul.f32 %v857, %v859
    %v864 = vadd.f32 %v838, %v860
    %v865 = vadd.f32 %v839, %v861
    %v866 = vadd.f32 %v840, %v862
    %v867 = vadd.f32 %v841, %v863
    %s868 = sld [smem:[#allocation3 + $0x1f]]
    %v869 = vstv %s868
    %v870 = vmul.f32 %v58, %v869
    %v871 = vmul.f32 %v59, %v869
    %v872 = vmul.f32 %v60, %v869
    %v873 = vmul.f32 %v61, %v869
    %s874 = sld [smem:[#allocation5 + $0x1f]]
    %v875 = vstv %s874
    %v876 = vadd.f32 %v870, %v875
    %v877 = vadd.f32 %v871, %v875
    %v878 = vadd.f32 %v872, %v875
    %v879 = vadd.f32 %v873, %v875
    %v880 = vmax.f32 %v876, 0.0
    %v881 = vmax.f32 %v877, 0.0
    %v882 = vmax.f32 %v878, 0.0
    %v883 = vmax.f32 %v879, 0.0
    %s884 = sld [smem:[#allocation7 + $0x1f]]
    %v885 = vstv %s884
    %v886 = vmul.f32 %v880, %v885
    %v887 = vmul.f32 %v881, %v885
    %v888 = vmul.f32 %v882, %v885
    %v889 = vmul.f32 %v883, %v885
    %v890 = vadd.f32 %v864, %v886
    %v891 = vadd.f32 %v865, %v887
    %v892 = vadd.f32 %v866, %v888
    %v893 = vadd.f32 %v867, %v889
    %s894 = sld [smem:[#allocation3 + $0x20]]
    %v895 = vstv %s894
    %v896 = vmul.f32 %v58, %v895
    %v897 = vmul.f32 %v59, %v895
    %v898 = vmul.f32 %v60, %v895
    %v899 = vmul.f32 %v61, %v895
    %s900 = sld [smem:[#allocation5 + $0x20]]
    %v901 = vstv %s900
    %v902 = vadd.f32 %v896, %v901
    %v903 = vadd.f32 %v897, %v901
    %v904 = vadd.f32 %v898, %v901
    %v905 = vadd.f32 %v899, %v901
    %v906 = vmax.f32 %v902, 0.0
    %v907 = vmax.f32 %v903, 0.0
    %v908 = vmax.f32 %v904, 0.0
    %v909 = vmax.f32 %v905, 0.0
    %s910 = sld [smem:[#allocation7 + $0x20]]
    %v911 = vstv %s910
    %v912 = vmul.f32 %v906, %v911
    %v913 = vmul.f32 %v907, %v911
    %v914 = vmul.f32 %v908, %v911
    %v915 = vmul.f32 %v909, %v911
    %v916 = vadd.f32 %v890, %v912
    %v917 = vadd.f32 %v891, %v913
    %v918 = vadd.f32 %v892, %v914
    %v919 = vadd.f32 %v893, %v915
    %s920 = sld [smem:[#allocation3 + $0x21]]
    %v921 = vstv %s920
    %v922 = vmul.f32 %v58, %v921
    %v923 = vmul.f32 %v59, %v921
    %v924 = vmul.f32 %v60, %v921
    %v925 = vmul.f32 %v61, %v921
    %s926 = sld [smem:[#allocation5 + $0x21]]
    %v927 = vstv %s926
    %v928 = vadd.f32 %v922, %v927
    %v929 = vadd.f32 %v923, %v927
    %v930 = vadd.f32 %v924, %v927
    %v931 = vadd.f32 %v925, %v927
    %v932 = vmax.f32 %v928, 0.0
    %v933 = vmax.f32 %v929, 0.0
    %v934 = vmax.f32 %v930, 0.0
    %v935 = vmax.f32 %v931, 0.0
    %s936 = sld [smem:[#allocation7 + $0x21]]
    %v937 = vstv %s936
    %v938 = vmul.f32 %v932, %v937
    %v939 = vmul.f32 %v933, %v937
    %v940 = vmul.f32 %v934, %v937
    %v941 = vmul.f32 %v935, %v937
    %v942 = vadd.f32 %v916, %v938
    %v943 = vadd.f32 %v917, %v939
    %v944 = vadd.f32 %v918, %v940
    %v945 = vadd.f32 %v919, %v941
    %s946 = sld [smem:[#allocation3 + $0x22]]
    %v947 = vstv %s946
    %v948 = vmul.f32 %v58, %v947
    %v949 = vmul.f32 %v59, %v947
    %v950 = vmul.f32 %v60, %v947
    %v951 = vmul.f32 %v61, %v947
    %s952 = sld [smem:[#allocation5 + $0x22]]
    %v953 = vstv %s952
    %v954 = vadd.f32 %v948, %v953
    %v955 = vadd.f32 %v949, %v953
    %v956 = vadd.f32 %v950, %v953
    %v957 = vadd.f32 %v951, %v953
    %v958 = vmax.f32 %v954, 0.0
    %v959 = vmax.f32 %v955, 0.0
    %v960 = vmax.f32 %v956, 0.0
    %v961 = vmax.f32 %v957, 0.0
    %s962 = sld [smem:[#allocation7 + $0x22]]
    %v963 = vstv %s962
    %v964 = vmul.f32 %v958, %v963
    %v965 = vmul.f32 %v959, %v963
    %v966 = vmul.f32 %v960, %v963
    %v967 = vmul.f32 %v961, %v963
    %v968 = vadd.f32 %v942, %v964
    %v969 = vadd.f32 %v943, %v965
    %v970 = vadd.f32 %v944, %v966
    %v971 = vadd.f32 %v945, %v967
    %s972 = sld [smem:[#allocation3 + $0x23]]
    %v973 = vstv %s972
    %v974 = vmul.f32 %v58, %v973
    %v975 = vmul.f32 %v59, %v973
    %v976 = vmul.f32 %v60, %v973
    %v977 = vmul.f32 %v61, %v973
    %s978 = sld [smem:[#allocation5 + $0x23]]
    %v979 = vstv %s978
    %v980 = vadd.f32 %v974, %v979
    %v981 = vadd.f32 %v975, %v979
    %v982 = vadd.f32 %v976, %v979
    %v983 = vadd.f32 %v977, %v979
    %v984 = vmax.f32 %v980, 0.0
    %v985 = vmax.f32 %v981, 0.0
    %v986 = vmax.f32 %v982, 0.0
    %v987 = vmax.f32 %v983, 0.0
    %s988 = sld [smem:[#allocation7 + $0x23]]
    %v989 = vstv %s988
    %v990 = vmul.f32 %v984, %v989
    %v991 = vmul.f32 %v985, %v989
    %v992 = vmul.f32 %v986, %v989
    %v993 = vmul.f32 %v987, %v989
    %v994 = vadd.f32 %v968, %v990
    %v995 = vadd.f32 %v969, %v991
    %v996 = vadd.f32 %v970, %v992
    %v997 = vadd.f32 %v971, %v993
    %s998 = sld [smem:[#allocation3 + $0x24]]
    %v999 = vstv %s998
    %v1000 = vmul.f32 %v58, %v999
    %v1001 = vmul.f32 %v59, %v999
    %v1002 = vmul.f32 %v60, %v999
    %v1003 = vmul.f32 %v61, %v999
    %s1004 = sld [smem:[#allocation5 + $0x24]]
    %v1005 = vstv %s1004
    %v1006 = vadd.f32 %v1000, %v1005
    %v1007 = vadd.f32 %v1001, %v1005
    %v1008 = vadd.f32 %v1002, %v1005
    %v1009 = vadd.f32 %v1003, %v1005
    %v1010 = vmax.f32 %v1006, 0.0
    %v1011 = vmax.f32 %v1007, 0.0
    %v1012 = vmax.f32 %v1008, 0.0
    %v1013 = vmax.f32 %v1009, 0.0
    %s1014 = sld [smem:[#allocation7 + $0x24]]
    %v1015 = vstv %s1014
    %v1016 = vmul.f32 %v1010, %v1015
    %v1017 = vmul.f32 %v1011, %v1015
    %v1018 = vmul.f32 %v1012, %v1015
    %v1019 = vmul.f32 %v1013, %v1015
    %v1020 = vadd.f32 %v994, %v1016
    %v1021 = vadd.f32 %v995, %v1017
    %v1022 = vadd.f32 %v996, %v1018
    %v1023 = vadd.f32 %v997, %v1019
    %s1024 = sld [smem:[#allocation3 + $0x25]]
    %v1025 = vstv %s1024
    %v1026 = vmul.f32 %v58, %v1025
    %v1027 = vmul.f32 %v59, %v1025
    %v1028 = vmul.f32 %v60, %v1025
    %v1029 = vmul.f32 %v61, %v1025
    %s1030 = sld [smem:[#allocation5 + $0x25]]
    %v1031 = vstv %s1030
    %v1032 = vadd.f32 %v1026, %v1031
    %v1033 = vadd.f32 %v1027, %v1031
    %v1034 = vadd.f32 %v1028, %v1031
    %v1035 = vadd.f32 %v1029, %v1031
    %v1036 = vmax.f32 %v1032, 0.0
    %v1037 = vmax.f32 %v1033, 0.0
    %v1038 = vmax.f32 %v1034, 0.0
    %v1039 = vmax.f32 %v1035, 0.0
    %s1040 = sld [smem:[#allocation7 + $0x25]]
    %v1041 = vstv %s1040
    %v1042 = vmul.f32 %v1036, %v1041
    %v1043 = vmul.f32 %v1037, %v1041
    %v1044 = vmul.f32 %v1038, %v1041
    %v1045 = vmul.f32 %v1039, %v1041
    %v1046 = vadd.f32 %v1020, %v1042
    %v1047 = vadd.f32 %v1021, %v1043
    %v1048 = vadd.f32 %v1022, %v1044
    %v1049 = vadd.f32 %v1023, %v1045
    %s1050 = sld [smem:[#allocation3 + $0x26]]
    %v1051 = vstv %s1050
    %v1052 = vmul.f32 %v58, %v1051
    %v1053 = vmul.f32 %v59, %v1051
    %v1054 = vmul.f32 %v60, %v1051
    %v1055 = vmul.f32 %v61, %v1051
    %s1056 = sld [smem:[#allocation5 + $0x26]]
    %v1057 = vstv %s1056
    %v1058 = vadd.f32 %v1052, %v1057
    %v1059 = vadd.f32 %v1053, %v1057
    %v1060 = vadd.f32 %v1054, %v1057
    %v1061 = vadd.f32 %v1055, %v1057
    %v1062 = vmax.f32 %v1058, 0.0
    %v1063 = vmax.f32 %v1059, 0.0
    %v1064 = vmax.f32 %v1060, 0.0
    %v1065 = vmax.f32 %v1061, 0.0
    %s1066 = sld [smem:[#allocation7 + $0x26]]
    %v1067 = vstv %s1066
    %v1068 = vmul.f32 %v1062, %v1067
    %v1069 = vmul.f32 %v1063, %v1067
    %v1070 = vmul.f32 %v1064, %v1067
    %v1071 = vmul.f32 %v1065, %v1067
    %v1072 = vadd.f32 %v1046, %v1068
    %v1073 = vadd.f32 %v1047, %v1069
    %v1074 = vadd.f32 %v1048, %v1070
    %v1075 = vadd.f32 %v1049, %v1071
    %s1076 = sld [smem:[#allocation3 + $0x27]]
    %v1077 = vstv %s1076
    %v1078 = vmul.f32 %v58, %v1077
    %v1079 = vmul.f32 %v59, %v1077
    %v1080 = vmul.f32 %v60, %v1077
    %v1081 = vmul.f32 %v61, %v1077
    %s1082 = sld [smem:[#allocation5 + $0x27]]
    %v1083 = vstv %s1082
    %v1084 = vadd.f32 %v1078, %v1083
    %v1085 = vadd.f32 %v1079, %v1083
    %v1086 = vadd.f32 %v1080, %v1083
    %v1087 = vadd.f32 %v1081, %v1083
    %v1088 = vmax.f32 %v1084, 0.0
    %v1089 = vmax.f32 %v1085, 0.0
    %v1090 = vmax.f32 %v1086, 0.0
    %v1091 = vmax.f32 %v1087, 0.0
    %s1092 = sld [smem:[#allocation7 + $0x27]]
    %v1093 = vstv %s1092
    %v1094 = vmul.f32 %v1088, %v1093
    %v1095 = vmul.f32 %v1089, %v1093
    %v1096 = vmul.f32 %v1090, %v1093
    %v1097 = vmul.f32 %v1091, %v1093
    %v1098 = vadd.f32 %v1072, %v1094
    %v1099 = vadd.f32 %v1073, %v1095
    %v1100 = vadd.f32 %v1074, %v1096
    %v1101 = vadd.f32 %v1075, %v1097
    %s1102 = sld [smem:[#allocation3 + $0x28]]
    %v1103 = vstv %s1102
    %v1104 = vmul.f32 %v58, %v1103
    %v1105 = vmul.f32 %v59, %v1103
    %v1106 = vmul.f32 %v60, %v1103
    %v1107 = vmul.f32 %v61, %v1103
    %s1108 = sld [smem:[#allocation5 + $0x28]]
    %v1109 = vstv %s1108
    %v1110 = vadd.f32 %v1104, %v1109
    %v1111 = vadd.f32 %v1105, %v1109
    %v1112 = vadd.f32 %v1106, %v1109
    %v1113 = vadd.f32 %v1107, %v1109
    %v1114 = vmax.f32 %v1110, 0.0
    %v1115 = vmax.f32 %v1111, 0.0
    %v1116 = vmax.f32 %v1112, 0.0
    %v1117 = vmax.f32 %v1113, 0.0
    %s1118 = sld [smem:[#allocation7 + $0x28]]
    %v1119 = vstv %s1118
    %v1120 = vmul.f32 %v1114, %v1119
    %v1121 = vmul.f32 %v1115, %v1119
    %v1122 = vmul.f32 %v1116, %v1119
    %v1123 = vmul.f32 %v1117, %v1119
    %v1124 = vadd.f32 %v1098, %v1120
    %v1125 = vadd.f32 %v1099, %v1121
    %v1126 = vadd.f32 %v1100, %v1122
    %v1127 = vadd.f32 %v1101, %v1123
    %s1128 = sld [smem:[#allocation3 + $0x29]]
    %v1129 = vstv %s1128
    %v1130 = vmul.f32 %v58, %v1129
    %v1131 = vmul.f32 %v59, %v1129
    %v1132 = vmul.f32 %v60, %v1129
    %v1133 = vmul.f32 %v61, %v1129
    %s1134 = sld [smem:[#allocation5 + $0x29]]
    %v1135 = vstv %s1134
    %v1136 = vadd.f32 %v1130, %v1135
    %v1137 = vadd.f32 %v1131, %v1135
    %v1138 = vadd.f32 %v1132, %v1135
    %v1139 = vadd.f32 %v1133, %v1135
    %v1140 = vmax.f32 %v1136, 0.0
    %v1141 = vmax.f32 %v1137, 0.0
    %v1142 = vmax.f32 %v1138, 0.0
    %v1143 = vmax.f32 %v1139, 0.0
    %s1144 = sld [smem:[#allocation7 + $0x29]]
    %v1145 = vstv %s1144
    %v1146 = vmul.f32 %v1140, %v1145
    %v1147 = vmul.f32 %v1141, %v1145
    %v1148 = vmul.f32 %v1142, %v1145
    %v1149 = vmul.f32 %v1143, %v1145
    %v1150 = vadd.f32 %v1124, %v1146
    %v1151 = vadd.f32 %v1125, %v1147
    %v1152 = vadd.f32 %v1126, %v1148
    %v1153 = vadd.f32 %v1127, %v1149
    %s1154 = sld [smem:[#allocation3 + $0x2a]]
    %v1155 = vstv %s1154
    %v1156 = vmul.f32 %v58, %v1155
    %v1157 = vmul.f32 %v59, %v1155
    %v1158 = vmul.f32 %v60, %v1155
    %v1159 = vmul.f32 %v61, %v1155
    %s1160 = sld [smem:[#allocation5 + $0x2a]]
    %v1161 = vstv %s1160
    %v1162 = vadd.f32 %v1156, %v1161
    %v1163 = vadd.f32 %v1157, %v1161
    %v1164 = vadd.f32 %v1158, %v1161
    %v1165 = vadd.f32 %v1159, %v1161
    %v1166 = vmax.f32 %v1162, 0.0
    %v1167 = vmax.f32 %v1163, 0.0
    %v1168 = vmax.f32 %v1164, 0.0
    %v1169 = vmax.f32 %v1165, 0.0
    %s1170 = sld [smem:[#allocation7 + $0x2a]]
    %v1171 = vstv %s1170
    %v1172 = vmul.f32 %v1166, %v1171
    %v1173 = vmul.f32 %v1167, %v1171
    %v1174 = vmul.f32 %v1168, %v1171
    %v1175 = vmul.f32 %v1169, %v1171
    %v1176 = vadd.f32 %v1150, %v1172
    %v1177 = vadd.f32 %v1151, %v1173
    %v1178 = vadd.f32 %v1152, %v1174
    %v1179 = vadd.f32 %v1153, %v1175
    %s1180 = sld [smem:[#allocation3 + $0x2b]]
    %v1181 = vstv %s1180
    %v1182 = vmul.f32 %v58, %v1181
    %v1183 = vmul.f32 %v59, %v1181
    %v1184 = vmul.f32 %v60, %v1181
    %v1185 = vmul.f32 %v61, %v1181
    %s1186 = sld [smem:[#allocation5 + $0x2b]]
    %v1187 = vstv %s1186
    %v1188 = vadd.f32 %v1182, %v1187
    %v1189 = vadd.f32 %v1183, %v1187
    %v1190 = vadd.f32 %v1184, %v1187
    %v1191 = vadd.f32 %v1185, %v1187
    %v1192 = vmax.f32 %v1188, 0.0
    %v1193 = vmax.f32 %v1189, 0.0
    %v1194 = vmax.f32 %v1190, 0.0
    %v1195 = vmax.f32 %v1191, 0.0
    %s1196 = sld [smem:[#allocation7 + $0x2b]]
    %v1197 = vstv %s1196
    %v1198 = vmul.f32 %v1192, %v1197
    %v1199 = vmul.f32 %v1193, %v1197
    %v1200 = vmul.f32 %v1194, %v1197
    %v1201 = vmul.f32 %v1195, %v1197
    %v1202 = vadd.f32 %v1176, %v1198
    %v1203 = vadd.f32 %v1177, %v1199
    %v1204 = vadd.f32 %v1178, %v1200
    %v1205 = vadd.f32 %v1179, %v1201
    %s1206 = sld [smem:[#allocation3 + $0x2c]]
    %v1207 = vstv %s1206
    %v1208 = vmul.f32 %v58, %v1207
    %v1209 = vmul.f32 %v59, %v1207
    %v1210 = vmul.f32 %v60, %v1207
    %v1211 = vmul.f32 %v61, %v1207
    %s1212 = sld [smem:[#allocation5 + $0x2c]]
    %v1213 = vstv %s1212
    %v1214 = vadd.f32 %v1208, %v1213
    %v1215 = vadd.f32 %v1209, %v1213
    %v1216 = vadd.f32 %v1210, %v1213
    %v1217 = vadd.f32 %v1211, %v1213
    %v1218 = vmax.f32 %v1214, 0.0
    %v1219 = vmax.f32 %v1215, 0.0
    %v1220 = vmax.f32 %v1216, 0.0
    %v1221 = vmax.f32 %v1217, 0.0
    %s1222 = sld [smem:[#allocation7 + $0x2c]]
    %v1223 = vstv %s1222
    %v1224 = vmul.f32 %v1218, %v1223
    %v1225 = vmul.f32 %v1219, %v1223
    %v1226 = vmul.f32 %v1220, %v1223
    %v1227 = vmul.f32 %v1221, %v1223
    %v1228 = vadd.f32 %v1202, %v1224
    %v1229 = vadd.f32 %v1203, %v1225
    %v1230 = vadd.f32 %v1204, %v1226
    %v1231 = vadd.f32 %v1205, %v1227
    %s1232 = sld [smem:[#allocation3 + $0x2d]]
    %v1233 = vstv %s1232
    %v1234 = vmul.f32 %v58, %v1233
    %v1235 = vmul.f32 %v59, %v1233
    %v1236 = vmul.f32 %v60, %v1233
    %v1237 = vmul.f32 %v61, %v1233
    %s1238 = sld [smem:[#allocation5 + $0x2d]]
    %v1239 = vstv %s1238
    %v1240 = vadd.f32 %v1234, %v1239
    %v1241 = vadd.f32 %v1235, %v1239
    %v1242 = vadd.f32 %v1236, %v1239
    %v1243 = vadd.f32 %v1237, %v1239
    %v1244 = vmax.f32 %v1240, 0.0
    %v1245 = vmax.f32 %v1241, 0.0
    %v1246 = vmax.f32 %v1242, 0.0
    %v1247 = vmax.f32 %v1243, 0.0
    %s1248 = sld [smem:[#allocation7 + $0x2d]]
    %v1249 = vstv %s1248
    %v1250 = vmul.f32 %v1244, %v1249
    %v1251 = vmul.f32 %v1245, %v1249
    %v1252 = vmul.f32 %v1246, %v1249
    %v1253 = vmul.f32 %v1247, %v1249
    %v1254 = vadd.f32 %v1228, %v1250
    %v1255 = vadd.f32 %v1229, %v1251
    %v1256 = vadd.f32 %v1230, %v1252
    %v1257 = vadd.f32 %v1231, %v1253
    %s1258 = sld [smem:[#allocation3 + $0x2e]]
    %v1259 = vstv %s1258
    %v1260 = vmul.f32 %v58, %v1259
    %v1261 = vmul.f32 %v59, %v1259
    %v1262 = vmul.f32 %v60, %v1259
    %v1263 = vmul.f32 %v61, %v1259
    %s1264 = sld [smem:[#allocation5 + $0x2e]]
    %v1265 = vstv %s1264
    %v1266 = vadd.f32 %v1260, %v1265
    %v1267 = vadd.f32 %v1261, %v1265
    %v1268 = vadd.f32 %v1262, %v1265
    %v1269 = vadd.f32 %v1263, %v1265
    %v1270 = vmax.f32 %v1266, 0.0
    %v1271 = vmax.f32 %v1267, 0.0
    %v1272 = vmax.f32 %v1268, 0.0
    %v1273 = vmax.f32 %v1269, 0.0
    %s1274 = sld [smem:[#allocation7 + $0x2e]]
    %v1275 = vstv %s1274
    %v1276 = vmul.f32 %v1270, %v1275
    %v1277 = vmul.f32 %v1271, %v1275
    %v1278 = vmul.f32 %v1272, %v1275
    %v1279 = vmul.f32 %v1273, %v1275
    %v1280 = vadd.f32 %v1254, %v1276
    %v1281 = vadd.f32 %v1255, %v1277
    %v1282 = vadd.f32 %v1256, %v1278
    %v1283 = vadd.f32 %v1257, %v1279
    %s1284 = sld [smem:[#allocation3 + $0x2f]]
    %v1285 = vstv %s1284
    %v1286 = vmul.f32 %v58, %v1285
    %v1287 = vmul.f32 %v59, %v1285
    %v1288 = vmul.f32 %v60, %v1285
    %v1289 = vmul.f32 %v61, %v1285
    %s1290 = sld [smem:[#allocation5 + $0x2f]]
    %v1291 = vstv %s1290
    %v1292 = vadd.f32 %v1286, %v1291
    %v1293 = vadd.f32 %v1287, %v1291
    %v1294 = vadd.f32 %v1288, %v1291
    %v1295 = vadd.f32 %v1289, %v1291
    %v1296 = vmax.f32 %v1292, 0.0
    %v1297 = vmax.f32 %v1293, 0.0
    %v1298 = vmax.f32 %v1294, 0.0
    %v1299 = vmax.f32 %v1295, 0.0
    %s1300 = sld [smem:[#allocation7 + $0x2f]]
    %v1301 = vstv %s1300
    %v1302 = vmul.f32 %v1296, %v1301
    %v1303 = vmul.f32 %v1297, %v1301
    %v1304 = vmul.f32 %v1298, %v1301
    %v1305 = vmul.f32 %v1299, %v1301
    %v1306 = vadd.f32 %v1280, %v1302
    %v1307 = vadd.f32 %v1281, %v1303
    %v1308 = vadd.f32 %v1282, %v1304
    %v1309 = vadd.f32 %v1283, %v1305
    %s1310 = sld [smem:[#allocation3 + $0x30]]
    %v1311 = vstv %s1310
    %v1312 = vmul.f32 %v58, %v1311
    %v1313 = vmul.f32 %v59, %v1311
    %v1314 = vmul.f32 %v60, %v1311
    %v1315 = vmul.f32 %v61, %v1311
    %s1316 = sld [smem:[#allocation5 + $0x30]]
    %v1317 = vstv %s1316
    %v1318 = vadd.f32 %v1312, %v1317
    %v1319 = vadd.f32 %v1313, %v1317
    %v1320 = vadd.f32 %v1314, %v1317
    %v1321 = vadd.f32 %v1315, %v1317
    %v1322 = vmax.f32 %v1318, 0.0
    %v1323 = vmax.f32 %v1319, 0.0
    %v1324 = vmax.f32 %v1320, 0.0
    %v1325 = vmax.f32 %v1321, 0.0
    %s1326 = sld [smem:[#allocation7 + $0x30]]
    %v1327 = vstv %s1326
    %v1328 = vmul.f32 %v1322, %v1327
    %v1329 = vmul.f32 %v1323, %v1327
    %v1330 = vmul.f32 %v1324, %v1327
    %v1331 = vmul.f32 %v1325, %v1327
    %v1332 = vadd.f32 %v1306, %v1328
    %v1333 = vadd.f32 %v1307, %v1329
    %v1334 = vadd.f32 %v1308, %v1330
    %v1335 = vadd.f32 %v1309, %v1331
    %s1336 = sld [smem:[#allocation3 + $0x31]]
    %v1337 = vstv %s1336
    %v1338 = vmul.f32 %v58, %v1337
    %v1339 = vmul.f32 %v59, %v1337
    %v1340 = vmul.f32 %v60, %v1337
    %v1341 = vmul.f32 %v61, %v1337
    %s1342 = sld [smem:[#allocation5 + $0x31]]
    %v1343 = vstv %s1342
    %v1344 = vadd.f32 %v1338, %v1343
    %v1345 = vadd.f32 %v1339, %v1343
    %v1346 = vadd.f32 %v1340, %v1343
    %v1347 = vadd.f32 %v1341, %v1343
    %v1348 = vmax.f32 %v1344, 0.0
    %v1349 = vmax.f32 %v1345, 0.0
    %v1350 = vmax.f32 %v1346, 0.0
    %v1351 = vmax.f32 %v1347, 0.0
    %s1352 = sld [smem:[#allocation7 + $0x31]]
    %v1353 = vstv %s1352
    %v1354 = vmul.f32 %v1348, %v1353
    %v1355 = vmul.f32 %v1349, %v1353
    %v1356 = vmul.f32 %v1350, %v1353
    %v1357 = vmul.f32 %v1351, %v1353
    %v1358 = vadd.f32 %v1332, %v1354
    %v1359 = vadd.f32 %v1333, %v1355
    %v1360 = vadd.f32 %v1334, %v1356
    %v1361 = vadd.f32 %v1335, %v1357
    %v1362 = vstv %s57
    %v1363 = vadd.f32 %v1358, %v1362
    %v1364 = vadd.f32 %v1359, %v1362
    %v1365 = vadd.f32 %v1360, %v1362
    %v1366 = vadd.f32 %v1361, %v1362
    %1367 = vst [vmem:[%s5] sm:$0xff] %v1363
    %1368 = vst [vmem:[%s5 + $0x8] sm:$0xff] %v1364
    %1369 = vst [vmem:[%s5 + $0x10] sm:$0xff] %v1365
    %1370 = vst [vmem:[%s5 + $0x18] sm:$0xff] %v1366
    // Predicated region
    $region34: #{one_model_forward.1} parent=1 // pred_check
      _
    $region35: #{one_model_forward.1} parent=1 // pred_check_branch
      %1372 = sbr.rel (0) target = $region37
    $region36: #{one_model_forward.1} parent=1 // pred_region
      _
    $region37: #{one_model_forward.1} parent=1 // pred_fallthru
      _
    // Predicated region
    $region38: #{one_model_forward.1} parent=1 // pred_check
      _
    $region39: #{one_model_forward.1} parent=1 // pred_check_branch
      %1374 = sbr.rel (0) target = $region41
    $region40: #{one_model_forward.1} parent=1 // pred_region
      _
    $region41: #{one_model_forward.1} parent=1 // pred_fallthru
      _
    %1375 = vsyncpa [#allocation4], 1
    %1376 = vsyncpa [#allocation6], 1

</llo_original>
